<compile_context>
chip_gen: v5e
topology: v5e:2x2
jax: 0.10.0
libtpu: 0.0.40
codegen_flags: <defaults>
</compile_context>

<pallas_src>
import math

import jax
import jax.numpy as jnp
from jax.experimental import pallas as pl
from jax.experimental.pallas import tpu as pltpu

# ----------------------------- config (small, synthetic "bert") --------------
BATCH = 2
SEQ = 8
HIDDEN = 32
NUM_HEADS = 2
HEAD_DIM = HIDDEN // NUM_HEADS
INTERMEDIATE = 64
NUM_LAYERS = 2
VOCAB = 100
TYPE_VOCAB = 2
MAX_POS = 16
NUM_CLASSES = 2
FC_PAD = 128                      # lane-dense classifier output width
VEC_W = 128                       # lane width of the packed vector-param table
LN_EPS = 1e-12
ATTN_SCALE = 1.0 / math.sqrt(HEAD_DIM)

# packed vector-parameter table row layout
ROW_EMB_G = 0
ROW_EMB_B = 1
ROW_FC_B = 2
ROW_LAYER0 = 3
ROWS_PER_LAYER = 10
# per-layer row offsets
R_BQ, R_BK, R_BV, R_BO, R_LN1G, R_LN1B, R_B1, R_B2, R_LN2G, R_LN2B = range(10)
VEC_ROWS = ROW_LAYER0 + ROWS_PER_LAYER * NUM_LAYERS


# ----------------------------- in-kernel helpers ------------------------------
def _layernorm(x, g, b, eps=LN_EPS):
    mu = jnp.mean(x, axis=-1, keepdims=True)
    var = jnp.mean((x - mu) * (x - mu), axis=-1, keepdims=True)
    return (x - mu) * jax.lax.rsqrt(var + eps) * g + b


def _gelu(x):
    # TODO(synk): HF BERT default is exact erf-GELU; tanh approximation used
    # here (guaranteed Mosaic lowering via jnp.tanh on the EUP).
    c = math.sqrt(2.0 / math.pi)
    return 0.5 * x * (1.0 + jnp.tanh(c * (x + 0.044715 * x * x * x)))


# ----------------------------- the fused kernel --------------------------------
def _teacher_kernel(emb_ref, mask_ref,
                    wq_ref, wk_ref, wv_ref, wo_ref, w1_ref, w2_ref,
                    fcw_ref, vec_ref,
                    out_ref, x_scr):
    """Single program: full forward for the whole (stacked) batch in VMEM."""

    def vrow(r, width=HIDDEN):
        # one row of the packed vector-parameter table, (1, width)
        return vec_ref[r:r + 1, :width]

    # ---- embedding LayerNorm (nn.Dropout -> identity in eval mode) ----------
    x_scr[...] = _layernorm(emb_ref[...], vrow(ROW_EMB_G), vrow(ROW_EMB_B))

    # ---- encoder layers: fully unrolled, activation resident in VMEM --------
    for l in range(NUM_LAYERS):
        base = ROW_LAYER0 + l * ROWS_PER_LAYER
        x = x_scr[...]                                          # (B*S, H)

        wq_l, wk_l, wv_l, wo_l = wq_ref[l], wk_ref[l], wv_ref[l], wo_ref[l]

        # three separate (H,H) projections (no sub-vreg lane slicing of a
        # fused 3H-wide result); 1/sqrt(Dh) folded into q
        q = (jnp.dot(x, wq_l, preferred_element_type=jnp.float32)
             + vrow(base + R_BQ)) * ATTN_SCALE
        k = jnp.dot(x, wk_l, preferred_element_type=jnp.float32) + vrow(base + R_BK)
        v = jnp.dot(x, wv_l, preferred_element_type=jnp.float32) + vrow(base + R_BV)

        # per-batch attention via 8-row-aligned sublane slices; per-head
        # output projection accumulated directly (no head concatenate)
        attn_rows = []
        for b in range(BATCH):
            rs = slice(b * SEQ, (b + 1) * SEQ)
            bias = mask_ref[b:b + 1, :]                         # (1, S) additive key bias
            acc_b = None
            for h in range(NUM_HEADS):
                cs = slice(h * HEAD_DIM, (h + 1) * HEAD_DIM)
                qh, kh, vh = q[rs, cs], k[rs, cs], v[rs, cs]
                s = jnp.einsum("qd,kd->qk", qh, kh,
                               preferred_element_type=jnp.float32) + bias
                m = jnp.max(s, axis=-1, keepdims=True)
                p = jnp.exp(s - m)
                p = p / jnp.sum(p, axis=-1, keepdims=True)      # exact divide
                ctx_h = jnp.dot(p, vh, preferred_element_type=jnp.float32)
                contrib = jnp.dot(ctx_h, wo_l[cs, :],           # 8-row-aligned wo slice
                                  preferred_element_type=jnp.float32)
                acc_b = contrib if acc_b is None else acc_b + contrib
            attn_rows.append(acc_b)
        attn = jnp.concatenate(attn_rows, axis=0) + vrow(base + R_BO)

        # residual + LayerNorm
        x = _layernorm(attn + x, vrow(base + R_LN1G), vrow(base + R_LN1B))

        # MLP (GELU) + residual + LayerNorm, on the full stacked rows
        h1 = _gelu(jnp.dot(x, w1_ref[l], preferred_element_type=jnp.float32)
                   + vrow(base + R_B1, INTERMEDIATE))
        h2 = jnp.dot(h1, w2_ref[l], preferred_element_type=jnp.float32) + vrow(base + R_B2)
        x_scr[...] = _layernorm(h2 + x, vrow(base + R_LN2G), vrow(base + R_LN2B))

    # ---- classifier head, lane-dense (B*S, 128) store ------------------------
    # Computed for every row (trivial work; MXU is idle); the wrapper extracts
    # the [CLS] rows (b*SEQ) and the 2 real logits.  Dropout = identity.
    logits = jnp.dot(x_scr[...], fcw_ref[...],
                     preferred_element_type=jnp.float32) + vec_ref[ROW_FC_B:ROW_FC_B + 1, :]
    out_ref[...] = logits.astype(out_ref.dtype)


# ----------------------------- parameter init ---------------------------------
def init_params(key):
    def nrm(k, shape):
        return 0.02 * jax.random.normal(k, shape, dtype=jnp.float32)

    ks = jax.random.split(key, 10)
    p = {
        "word_emb": nrm(ks[0], (VOCAB, HIDDEN)),
        "pos_emb": nrm(ks[1], (MAX_POS, HIDDEN)),
        "type_emb": nrm(ks[2], (TYPE_VOCAB, HIDDEN)),
        # stacked per-layer weight matrices (leading axis = layer)
        "wq": nrm(ks[3], (NUM_LAYERS, HIDDEN, HIDDEN)),
        "wk": nrm(ks[4], (NUM_LAYERS, HIDDEN, HIDDEN)),
        "wv": nrm(ks[5], (NUM_LAYERS, HIDDEN, HIDDEN)),
        "wo": nrm(ks[6], (NUM_LAYERS, HIDDEN, HIDDEN)),
        "w1": nrm(ks[7], (NUM_LAYERS, HIDDEN, INTERMEDIATE)),
        "w2": nrm(ks[8], (NUM_LAYERS, INTERMEDIATE, HIDDEN)),
        # classifier head nn.Linear(hidden, 2), zero-padded to 128 lanes
        "fc_w": jnp.pad(nrm(ks[9], (HIDDEN, NUM_CLASSES)),
                        ((0, 0), (0, FC_PAD - NUM_CLASSES))),
    }

    # packed (R, 128) table of all vector parameters (biases + LN gamma/beta)
    def row(vals):
        return jnp.pad(vals, (0, VEC_W - vals.shape[0]))

    ones_h = jnp.ones((HIDDEN,), jnp.float32)
    zeros_h = jnp.zeros((HIDDEN,), jnp.float32)
    zeros_i = jnp.zeros((INTERMEDIATE,), jnp.float32)

    rows = [
        row(ones_h),                       # emb LayerNorm gamma
        row(zeros_h),                      # emb LayerNorm beta
        jnp.zeros((VEC_W,), jnp.float32),  # fc bias (padded to 128)
    ]
    for _ in range(NUM_LAYERS):
        rows += [
            row(zeros_h),   # bq
            row(zeros_h),   # bk
            row(zeros_h),   # bv
            row(zeros_h),   # bo
            row(ones_h),    # ln1 gamma
            row(zeros_h),   # ln1 beta
            row(zeros_i),   # b1
            row(zeros_h),   # b2
            row(ones_h),    # ln2 gamma
            row(zeros_h),   # ln2 beta
        ]
    p["vecs"] = jnp.stack(rows, axis=0)     # (VEC_ROWS, 128)
    return p


_WEIGHT_KEYS = ("wq", "wk", "wv", "wo", "w1", "w2", "fc_w", "vecs")


def _full_spec(shape):
    """Full-array block, same block every (single) grid step."""
    zeros = (0,) * len(shape)
    return pl.BlockSpec(shape, lambda i, z=zeros: z)


# ----------------------------- model forward ----------------------------------
@jax.jit
def teacher_model_forward(params, input_ids, attention_mask, token_type_ids):
    B, S = input_ids.shape

    # ---- embeddings (gather is JAX glue; LayerNorm runs inside the kernel) ----
    positions = jnp.arange(S, dtype=jnp.int32)
    emb = (params["word_emb"][input_ids]
           + params["pos_emb"][positions][None, :, :]
           + params["type_emb"][token_type_ids]).astype(jnp.float32)
    emb = emb.reshape(B * S, HIDDEN)                      # batch folded into sublanes

    # additive attention mask over keys: (B, S)
    mask_add = (1.0 - attention_mask.astype(jnp.float32)) * -1e9

    weights = [params[k] for k in _WEIGHT_KEYS]

    out = pl.pallas_call(
        _teacher_kernel,
        out_shape=jax.ShapeDtypeStruct((B * S, FC_PAD), jnp.float32),
        grid=(1,),
        in_specs=[pl.BlockSpec((B * S, HIDDEN), lambda i: (0, 0)),
                  pl.BlockSpec((B, S), lambda i: (0, 0))]
                 + [_full_spec(w.shape) for w in weights],
        out_specs=pl.BlockSpec((B * S, FC_PAD), lambda i: (0, 0)),
        scratch_shapes=[pltpu.VMEM((B * S, HIDDEN), jnp.float32)],
        compiler_params=pltpu.CompilerParams(
            dimension_semantics=("arbitrary",)),
    )(emb, mask_add, *weights)

    # CLS rows (b*SEQ) and the 2 real logits of the lane-padded head output
    return out.reshape(B, S, FC_PAD)[:, 0, :NUM_CLASSES]


# ----------------------------- main --------------------------------------------
if __name__ == "__main__":
    key = jax.random.PRNGKey(0)
    kp, kid, ktt = jax.random.split(key, 3)

    params = init_params(kp)

    input_ids = jax.random.randint(kid, (BATCH, SEQ), 0, VOCAB, dtype=jnp.int32)
    token_type_ids = jax.random.randint(ktt, (BATCH, SEQ), 0, TYPE_VOCAB, dtype=jnp.int32)
    # second example has the last two tokens padded (mask = 0)
    attention_mask = jnp.array(
        [[1] * SEQ, [1] * (SEQ - 2) + [0, 0]], dtype=jnp.int32)

    logits = teacher_model_forward(params, input_ids, attention_mask, token_type_ids)
    jax.block_until_ready(logits)
    assert logits.shape == (BATCH, NUM_CLASSES)
    print("KERNEL_OK")
</pallas_src>

<mosaic_0001>
module attributes {stable_mosaic.version = 11 : i64} {
  func.func @_teacher_kernel(%arg0: i32, %arg1: memref<16x32xf32, #tpu.memory_space<vmem>>, %arg2: memref<2x8xf32, #tpu.memory_space<vmem>>, %arg3: memref<2x32x32xf32, #tpu.memory_space<vmem>>, %arg4: memref<2x32x32xf32, #tpu.memory_space<vmem>>, %arg5: memref<2x32x32xf32, #tpu.memory_space<vmem>>, %arg6: memref<2x32x32xf32, #tpu.memory_space<vmem>>, %arg7: memref<2x32x64xf32, #tpu.memory_space<vmem>>, %arg8: memref<2x64x32xf32, #tpu.memory_space<vmem>>, %arg9: memref<32x128xf32, #tpu.memory_space<vmem>>, %arg10: memref<23x128xf32, #tpu.memory_space<vmem>>, %arg11: memref<16x128xf32, #tpu.memory_space<vmem>>, %arg12: memref<16x32xf32, #tpu.memory_space<vmem>>) attributes {dimension_semantics = [#tpu.dimension_semantics<arbitrary>], iteration_bounds = array<i64: 1>, scalar_prefetch = 0 : i64, scratch_operands = 1 : i64, tpu.core_type = #tpu.core_type<tc>, window_params = [{pipeline_mode = #tpu.pipeline_mode<synchronous>, transform_indices = @transform_0, window_bounds = array<i64: 16, 32>}, {pipeline_mode = #tpu.pipeline_mode<synchronous>, transform_indices = @transform_1, window_bounds = array<i64: 2, 8>}, {pipeline_mode = #tpu.pipeline_mode<synchronous>, transform_indices = @transform_2, window_bounds = array<i64: 2, 32, 32>}, {pipeline_mode = #tpu.pipeline_mode<synchronous>, transform_indices = @transform_3, window_bounds = array<i64: 2, 32, 32>}, {pipeline_mode = #tpu.pipeline_mode<synchronous>, transform_indices = @transform_4, window_bounds = array<i64: 2, 32, 32>}, {pipeline_mode = #tpu.pipeline_mode<synchronous>, transform_indices = @transform_5, window_bounds = array<i64: 2, 32, 32>}, {pipeline_mode = #tpu.pipeline_mode<synchronous>, transform_indices = @transform_6, window_bounds = array<i64: 2, 32, 64>}, {pipeline_mode = #tpu.pipeline_mode<synchronous>, transform_indices = @transform_7, window_bounds = array<i64: 2, 64, 32>}, {pipeline_mode = #tpu.pipeline_mode<synchronous>, transform_indices = @transform_8, window_bounds = array<i64: 32, 128>}, {pipeline_mode = #tpu.pipeline_mode<synchronous>, transform_indices = @transform_9, window_bounds = array<i64: 23, 128>}, {pipeline_mode = #tpu.pipeline_mode<synchronous>, transform_indices = @transform_10, window_bounds = array<i64: 16, 128>}]} {
    %c0 = arith.constant 0 : index
    %c0_0 = arith.constant 0 : index
    %0 = vector.load %arg1[%c0, %c0_0] : memref<16x32xf32, #tpu.memory_space<vmem>>, vector<16x32xf32>
    %c0_1 = arith.constant 0 : index
    %c0_2 = arith.constant 0 : index
    %1 = vector.load %arg10[%c0_1, %c0_2] : memref<23x128xf32, #tpu.memory_space<vmem>>, vector<1x32xf32>
    %c1 = arith.constant 1 : index
    %c0_3 = arith.constant 0 : index
    %2 = vector.load %arg10[%c1, %c0_3] : memref<23x128xf32, #tpu.memory_space<vmem>>, vector<1x32xf32>
    %cst = arith.constant dense<0.000000e+00> : vector<16xf32>
    %3 = vector.multi_reduction <add>, %0, %cst [1] : vector<16x32xf32> to vector<16xf32>
    %4 = vector.shape_cast %3 : vector<16xf32> to vector<16x1xf32>
    %cst_4 = arith.constant 3.200000e+01 : f32
    %5 = vector.broadcast %cst_4 : f32 to vector<16x1xf32>
    %6 = arith.divf %4, %5 : vector<16x1xf32>
    %7 = vector.broadcast %6 : vector<16x1xf32> to vector<16x32xf32>
    %8 = arith.subf %0, %7 : vector<16x32xf32>
    %9 = vector.broadcast %6 : vector<16x1xf32> to vector<16x32xf32>
    %10 = arith.subf %0, %9 : vector<16x32xf32>
    %11 = arith.mulf %8, %10 : vector<16x32xf32>
    %cst_5 = arith.constant dense<0.000000e+00> : vector<16xf32>
    %12 = vector.multi_reduction <add>, %11, %cst_5 [1] : vector<16x32xf32> to vector<16xf32>
    %13 = vector.shape_cast %12 : vector<16xf32> to vector<16x1xf32>
    %cst_6 = arith.constant 3.200000e+01 : f32
    %14 = vector.broadcast %cst_6 : f32 to vector<16x1xf32>
    %15 = arith.divf %13, %14 : vector<16x1xf32>
    %16 = vector.broadcast %6 : vector<16x1xf32> to vector<16x32xf32>
    %17 = arith.subf %0, %16 : vector<16x32xf32>
    %cst_7 = arith.constant 9.99999996E-13 : f32
    %18 = vector.broadcast %cst_7 : f32 to vector<16x1xf32>
    %19 = arith.addf %15, %18 : vector<16x1xf32>
    %20 = math.rsqrt %19 : vector<16x1xf32>
    %21 = vector.broadcast %20 : vector<16x1xf32> to vector<16x32xf32>
    %22 = arith.mulf %17, %21 : vector<16x32xf32>
    %23 = vector.broadcast %1 : vector<1x32xf32> to vector<16x32xf32>
    %24 = arith.mulf %22, %23 : vector<16x32xf32>
    %25 = vector.broadcast %2 : vector<1x32xf32> to vector<16x32xf32>
    %26 = arith.addf %24, %25 : vector<16x32xf32>
    %c0_8 = arith.constant 0 : index
    %c0_9 = arith.constant 0 : index
    %27 = vector.load %arg12[%c0_8, %c0_9] : memref<16x32xf32, #tpu.memory_space<vmem>>, vector<16x32xf32>
    tpu.vector_store %arg12[%c0_8, %c0_9], %26 {strides = array<i32>} : memref<16x32xf32, #tpu.memory_space<vmem>>, vector<16x32xf32>,
    %c0_10 = arith.constant 0 : index
    %c0_11 = arith.constant 0 : index
    %28 = vector.load %arg12[%c0_10, %c0_11] : memref<16x32xf32, #tpu.memory_space<vmem>>, vector<16x32xf32>
    %c0_12 = arith.constant 0 : index
    %c0_13 = arith.constant 0 : index
    %c0_14 = arith.constant 0 : index
    %29 = vector.load %arg3[%c0_12, %c0_13, %c0_14] : memref<2x32x32xf32, #tpu.memory_space<vmem>>, vector<1x32x32xf32>
    %30 = vector.shape_cast %29 : vector<1x32x32xf32> to vector<32x32xf32>
    %c0_15 = arith.constant 0 : index
    %c0_16 = arith.constant 0 : index
    %c0_17 = arith.constant 0 : index
    %31 = vector.load %arg4[%c0_15, %c0_16, %c0_17] : memref<2x32x32xf32, #tpu.memory_space<vmem>>, vector<1x32x32xf32>
    %32 = vector.shape_cast %31 : vector<1x32x32xf32> to vector<32x32xf32>
    %c0_18 = arith.constant 0 : index
    %c0_19 = arith.constant 0 : index
    %c0_20 = arith.constant 0 : index
    %33 = vector.load %arg5[%c0_18, %c0_19, %c0_20] : memref<2x32x32xf32, #tpu.memory_space<vmem>>, vector<1x32x32xf32>
    %34 = vector.shape_cast %33 : vector<1x32x32xf32> to vector<32x32xf32>
    %c0_21 = arith.constant 0 : index
    %c0_22 = arith.constant 0 : index
    %c0_23 = arith.constant 0 : index
    %35 = vector.load %arg6[%c0_21, %c0_22, %c0_23] : memref<2x32x32xf32, #tpu.memory_space<vmem>>, vector<1x32x32xf32>
    %36 = vector.shape_cast %35 : vector<1x32x32xf32> to vector<32x32xf32>
    %cst_24 = arith.constant dense<0.000000e+00> : vector<16x32xf32>
    %37 = tpu.matmul %28, %30, %cst_24 {dimension_numbers = #tpu.dot_dimension_numbers<[1], [0], [0], [1], [0, 0, 1, 1], [], []>} : vector<16x32xf32>, vector<32x32xf32>, vector<16x32xf32> -> vector<16x32xf32>
    %c3 = arith.constant 3 : index
    %c0_25 = arith.constant 0 : index
    %38 = vector.load %arg10[%c3, %c0_25] : memref<23x128xf32, #tpu.memory_space<vmem>>, vector<1x32xf32>
    %39 = vector.broadcast %38 : vector<1x32xf32> to vector<16x32xf32>
    %40 = arith.addf %37, %39 : vector<16x32xf32>
    %cst_26 = arith.constant 2.500000e-01 : f32
    %41 = vector.broadcast %cst_26 : f32 to vector<16x32xf32>
    %42 = arith.mulf %40, %41 : vector<16x32xf32>
    %cst_27 = arith.constant dense<0.000000e+00> : vector<16x32xf32>
    %43 = tpu.matmul %28, %32, %cst_27 {dimension_numbers = #tpu.dot_dimension_numbers<[1], [0], [0], [1], [0, 0, 1, 1], [], []>} : vector<16x32xf32>, vector<32x32xf32>, vector<16x32xf32> -> vector<16x32xf32>
    %c4 = arith.constant 4 : index
    %c0_28 = arith.constant 0 : index
    %44 = vector.load %arg10[%c4, %c0_28] : memref<23x128xf32, #tpu.memory_space<vmem>>, vector<1x32xf32>
    %45 = vector.broadcast %44 : vector<1x32xf32> to vector<16x32xf32>
    %46 = arith.addf %43, %45 : vector<16x32xf32>
    %cst_29 = arith.constant dense<0.000000e+00> : vector<16x32xf32>
    %47 = tpu.matmul %28, %34, %cst_29 {dimension_numbers = #tpu.dot_dimension_numbers<[1], [0], [0], [1], [0, 0, 1, 1], [], []>} : vector<16x32xf32>, vector<32x32xf32>, vector<16x32xf32> -> vector<16x32xf32>
    %c5 = arith.constant 5 : index
    %c0_30 = arith.constant 0 : index
    %48 = vector.load %arg10[%c5, %c0_30] : memref<23x128xf32, #tpu.memory_space<vmem>>, vector<1x32xf32>
    %49 = vector.broadcast %48 : vector<1x32xf32> to vector<16x32xf32>
    %50 = arith.addf %47, %49 : vector<16x32xf32>
    %c0_31 = arith.constant 0 : index
    %c0_32 = arith.constant 0 : index
    %51 = vector.load %arg2[%c0_31, %c0_32] : memref<2x8xf32, #tpu.memory_space<vmem>>, vector<1x8xf32>
    %52 = vector.extract_strided_slice %42 {offsets = [0, 0], sizes = [8, 16], strides = [1, 1]} : vector<16x32xf32> to vector<8x16xf32>
    %53 = vector.extract_strided_slice %46 {offsets = [0, 0], sizes = [8, 16], strides = [1, 1]} : vector<16x32xf32> to vector<8x16xf32>
    %54 = vector.extract_strided_slice %50 {offsets = [0, 0], sizes = [8, 16], strides = [1, 1]} : vector<16x32xf32> to vector<8x16xf32>
    "tpu.trace_start"() <{level = 10 : i32, message = "qd,kd->qk"}> : () -> ()
    %cst_33 = arith.constant dense<0.000000e+00> : vector<8x8xf32>
    %55 = tpu.matmul %52, %53, %cst_33 {dimension_numbers = #tpu.dot_dimension_numbers<[1], [1], [0], [0], [0, 0, 1, 0], [], []>} : vector<8x16xf32>, vector<8x16xf32>, vector<8x8xf32> -> vector<8x8xf32>
    "tpu.trace_stop"() : () -> ()
    %56 = vector.broadcast %51 : vector<1x8xf32> to vector<8x8xf32>
    %57 = arith.addf %55, %56 : vector<8x8xf32>
    %cst_34 = arith.constant dense<0xFF800000> : vector<8xf32>
    %58 = vector.multi_reduction <maximumf>, %57, %cst_34 [1] : vector<8x8xf32> to vector<8xf32>
    %59 = vector.shape_cast %58 : vector<8xf32> to vector<8x1xf32>
    %60 = vector.broadcast %59 : vector<8x1xf32> to vector<8x8xf32>
    %61 = arith.subf %57, %60 : vector<8x8xf32>
    %62 = math.exp %61 : vector<8x8xf32>
    %cst_35 = arith.constant dense<0.000000e+00> : vector<8xf32>
    %63 = vector.multi_reduction <add>, %62, %cst_35 [1] : vector<8x8xf32> to vector<8xf32>
    %64 = vector.shape_cast %63 : vector<8xf32> to vector<8x1xf32>
    %65 = vector.broadcast %64 : vector<8x1xf32> to vector<8x8xf32>
    %66 = arith.divf %62, %65 : vector<8x8xf32>
    %cst_36 = arith.constant dense<0.000000e+00> : vector<8x16xf32>
    %67 = tpu.matmul %66, %54, %cst_36 {dimension_numbers = #tpu.dot_dimension_numbers<[1], [0], [0], [1], [0, 0, 1, 1], [], []>} : vector<8x8xf32>, vector<8x16xf32>, vector<8x16xf32> -> vector<8x16xf32>
    %68 = vector.extract_strided_slice %36 {offsets = [0, 0], sizes = [16, 32], strides = [1, 1]} : vector<32x32xf32> to vector<16x32xf32>
    %cst_37 = arith.constant dense<0.000000e+00> : vector<8x32xf32>
    %69 = tpu.matmul %67, %68, %cst_37 {dimension_numbers = #tpu.dot_dimension_numbers<[1], [0], [0], [1], [0, 0, 1, 1], [], []>} : vector<8x16xf32>, vector<16x32xf32>, vector<8x32xf32> -> vector<8x32xf32>
    %70 = vector.extract_strided_slice %42 {offsets = [0, 16], sizes = [8, 16], strides = [1, 1]} : vector<16x32xf32> to vector<8x16xf32>
    %71 = vector.extract_strided_slice %46 {offsets = [0, 16], sizes = [8, 16], strides = [1, 1]} : vector<16x32xf32> to vector<8x16xf32>
    %72 = vector.extract_strided_slice %50 {offsets = [0, 16], sizes = [8, 16], strides = [1, 1]} : vector<16x32xf32> to vector<8x16xf32>
    "tpu.trace_start"() <{level = 10 : i32, message = "qd,kd->qk"}> : () -> ()
    %cst_38 = arith.constant dense<0.000000e+00> : vector<8x8xf32>
    %73 = tpu.matmul %70, %71, %cst_38 {dimension_numbers = #tpu.dot_dimension_numbers<[1], [1], [0], [0], [0, 0, 1, 0], [], []>} : vector<8x16xf32>, vector<8x16xf32>, vector<8x8xf32> -> vector<8x8xf32>
    "tpu.trace_stop"() : () -> ()
    %74 = vector.broadcast %51 : vector<1x8xf32> to vector<8x8xf32>
    %75 = arith.addf %73, %74 : vector<8x8xf32>
    %cst_39 = arith.constant dense<0xFF800000> : vector<8xf32>
    %76 = vector.multi_reduction <maximumf>, %75, %cst_39 [1] : vector<8x8xf32> to vector<8xf32>
    %77 = vector.shape_cast %76 : vector<8xf32> to vector<8x1xf32>
    %78 = vector.broadcast %77 : vector<8x1xf32> to vector<8x8xf32>
    %79 = arith.subf %75, %78 : vector<8x8xf32>
    %80 = math.exp %79 : vector<8x8xf32>
    %cst_40 = arith.constant dense<0.000000e+00> : vector<8xf32>
    %81 = vector.multi_reduction <add>, %80, %cst_40 [1] : vector<8x8xf32> to vector<8xf32>
    %82 = vector.shape_cast %81 : vector<8xf32> to vector<8x1xf32>
    %83 = vector.broadcast %82 : vector<8x1xf32> to vector<8x8xf32>
    %84 = arith.divf %80, %83 : vector<8x8xf32>
    %cst_41 = arith.constant dense<0.000000e+00> : vector<8x16xf32>
    %85 = tpu.matmul %84, %72, %cst_41 {dimension_numbers = #tpu.dot_dimension_numbers<[1], [0], [0], [1], [0, 0, 1, 1], [], []>} : vector<8x8xf32>, vector<8x16xf32>, vector<8x16xf32> -> vector<8x16xf32>
    %86 = vector.extract_strided_slice %36 {offsets = [16, 0], sizes = [16, 32], strides = [1, 1]} : vector<32x32xf32> to vector<16x32xf32>
    %cst_42 = arith.constant dense<0.000000e+00> : vector<8x32xf32>
    %87 = tpu.matmul %85, %86, %cst_42 {dimension_numbers = #tpu.dot_dimension_numbers<[1], [0], [0], [1], [0, 0, 1, 1], [], []>} : vector<8x16xf32>, vector<16x32xf32>, vector<8x32xf32> -> vector<8x32xf32>
    %88 = arith.addf %69, %87 : vector<8x32xf32>
    %c1_43 = arith.constant 1 : index
    %c0_44 = arith.constant 0 : index
    %89 = vector.load %arg2[%c1_43, %c0_44] : memref<2x8xf32, #tpu.memory_space<vmem>>, vector<1x8xf32>
    %90 = vector.extract_strided_slice %42 {offsets = [8, 0], sizes = [8, 16], strides = [1, 1]} : vector<16x32xf32> to vector<8x16xf32>
    %91 = vector.extract_strided_slice %46 {offsets = [8, 0], sizes = [8, 16], strides = [1, 1]} : vector<16x32xf32> to vector<8x16xf32>
    %92 = vector.extract_strided_slice %50 {offsets = [8, 0], sizes = [8, 16], strides = [1, 1]} : vector<16x32xf32> to vector<8x16xf32>
    "tpu.trace_start"() <{level = 10 : i32, message = "qd,kd->qk"}> : () -> ()
    %cst_45 = arith.constant dense<0.000000e+00> : vector<8x8xf32>
    %93 = tpu.matmul %90, %91, %cst_45 {dimension_numbers = #tpu.dot_dimension_numbers<[1], [1], [0], [0], [0, 0, 1, 0], [], []>} : vector<8x16xf32>, vector<8x16xf32>, vector<8x8xf32> -> vector<8x8xf32>
    "tpu.trace_stop"() : () -> ()
    %94 = vector.broadcast %89 : vector<1x8xf32> to vector<8x8xf32>
    %95 = arith.addf %93, %94 : vector<8x8xf32>
    %cst_46 = arith.constant dense<0xFF800000> : vector<8xf32>
    %96 = vector.multi_reduction <maximumf>, %95, %cst_46 [1] : vector<8x8xf32> to vector<8xf32>
    %97 = vector.shape_cast %96 : vector<8xf32> to vector<8x1xf32>
    %98 = vector.broadcast %97 : vector<8x1xf32> to vector<8x8xf32>
    %99 = arith.subf %95, %98 : vector<8x8xf32>
    %100 = math.exp %99 : vector<8x8xf32>
    %cst_47 = arith.constant dense<0.000000e+00> : vector<8xf32>
    %101 = vector.multi_reduction <add>, %100, %cst_47 [1] : vector<8x8xf32> to vector<8xf32>
    %102 = vector.shape_cast %101 : vector<8xf32> to vector<8x1xf32>
    %103 = vector.broadcast %102 : vector<8x1xf32> to vector<8x8xf32>
    %104 = arith.divf %100, %103 : vector<8x8xf32>
    %cst_48 = arith.constant dense<0.000000e+00> : vector<8x16xf32>
    %105 = tpu.matmul %104, %92, %cst_48 {dimension_numbers = #tpu.dot_dimension_numbers<[1], [0], [0], [1], [0, 0, 1, 1], [], []>} : vector<8x8xf32>, vector<8x16xf32>, vector<8x16xf32> -> vector<8x16xf32>
    %106 = vector.extract_strided_slice %36 {offsets = [0, 0], sizes = [16, 32], strides = [1, 1]} : vector<32x32xf32> to vector<16x32xf32>
    %cst_49 = arith.constant dense<0.000000e+00> : vector<8x32xf32>
    %107 = tpu.matmul %105, %106, %cst_49 {dimension_numbers = #tpu.dot_dimension_numbers<[1], [0], [0], [1], [0, 0, 1, 1], [], []>} : vector<8x16xf32>, vector<16x32xf32>, vector<8x32xf32> -> vector<8x32xf32>
    %108 = vector.extract_strided_slice %42 {offsets = [8, 16], sizes = [8, 16], strides = [1, 1]} : vector<16x32xf32> to vector<8x16xf32>
    %109 = vector.extract_strided_slice %46 {offsets = [8, 16], sizes = [8, 16], strides = [1, 1]} : vector<16x32xf32> to vector<8x16xf32>
    %110 = vector.extract_strided_slice %50 {offsets = [8, 16], sizes = [8, 16], strides = [1, 1]} : vector<16x32xf32> to vector<8x16xf32>
    "tpu.trace_start"() <{level = 10 : i32, message = "qd,kd->qk"}> : () -> ()
    %cst_50 = arith.constant dense<0.000000e+00> : vector<8x8xf32>
    %111 = tpu.matmul %108, %109, %cst_50 {dimension_numbers = #tpu.dot_dimension_numbers<[1], [1], [0], [0], [0, 0, 1, 0], [], []>} : vector<8x16xf32>, vector<8x16xf32>, vector<8x8xf32> -> vector<8x8xf32>
    "tpu.trace_stop"() : () -> ()
    %112 = vector.broadcast %89 : vector<1x8xf32> to vector<8x8xf32>
    %113 = arith.addf %111, %112 : vector<8x8xf32>
    %cst_51 = arith.constant dense<0xFF800000> : vector<8xf32>
    %114 = vector.multi_reduction <maximumf>, %113, %cst_51 [1] : vector<8x8xf32> to vector<8xf32>
    %115 = vector.shape_cast %114 : vector<8xf32> to vector<8x1xf32>
    %116 = vector.broadcast %115 : vector<8x1xf32> to vector<8x8xf32>
    %117 = arith.subf %113, %116 : vector<8x8xf32>
    %118 = math.exp %117 : vector<8x8xf32>
    %cst_52 = arith.constant dense<0.000000e+00> : vector<8xf32>
    %119 = vector.multi_reduction <add>, %118, %cst_52 [1] : vector<8x8xf32> to vector<8xf32>
    %120 = vector.shape_cast %119 : vector<8xf32> to vector<8x1xf32>
    %121 = vector.broadcast %120 : vector<8x1xf32> to vector<8x8xf32>
    %122 = arith.divf %118, %121 : vector<8x8xf32>
    %cst_53 = arith.constant dense<0.000000e+00> : vector<8x16xf32>
    %123 = tpu.matmul %122, %110, %cst_53 {dimension_numbers = #tpu.dot_dimension_numbers<[1], [0], [0], [1], [0, 0, 1, 1], [], []>} : vector<8x8xf32>, vector<8x16xf32>, vector<8x16xf32> -> vector<8x16xf32>
    %124 = vector.extract_strided_slice %36 {offsets = [16, 0], sizes = [16, 32], strides = [1, 1]} : vector<32x32xf32> to vector<16x32xf32>
    %cst_54 = arith.constant dense<0.000000e+00> : vector<8x32xf32>
    %125 = tpu.matmul %123, %124, %cst_54 {dimension_numbers = #tpu.dot_dimension_numbers<[1], [0], [0], [1], [0, 0, 1, 1], [], []>} : vector<8x16xf32>, vector<16x32xf32>, vector<8x32xf32> -> vector<8x32xf32>
    %126 = arith.addf %107, %125 : vector<8x32xf32>
    %127 = tpu.concatenate %88, %126 in 0 : vector<8x32xf32>, vector<8x32xf32> -> vector<16x32xf32>
    %c6 = arith.constant 6 : index
    %c0_55 = arith.constant 0 : index
    %128 = vector.load %arg10[%c6, %c0_55] : memref<23x128xf32, #tpu.memory_space<vmem>>, vector<1x32xf32>
    %129 = vector.broadcast %128 : vector<1x32xf32> to vector<16x32xf32>
    %130 = arith.addf %127, %129 : vector<16x32xf32>
    %131 = arith.addf %130, %28 : vector<16x32xf32>
    %c7 = arith.constant 7 : index
    %c0_56 = arith.constant 0 : index
    %132 = vector.load %arg10[%c7, %c0_56] : memref<23x128xf32, #tpu.memory_space<vmem>>, vector<1x32xf32>
    %c8 = arith.constant 8 : index
    %c0_57 = arith.constant 0 : index
    %133 = vector.load %arg10[%c8, %c0_57] : memref<23x128xf32, #tpu.memory_space<vmem>>, vector<1x32xf32>
    %cst_58 = arith.constant dense<0.000000e+00> : vector<16xf32>
    %134 = vector.multi_reduction <add>, %131, %cst_58 [1] : vector<16x32xf32> to vector<16xf32>
    %135 = vector.shape_cast %134 : vector<16xf32> to vector<16x1xf32>
    %cst_59 = arith.constant 3.200000e+01 : f32
    %136 = vector.broadcast %cst_59 : f32 to vector<16x1xf32>
    %137 = arith.divf %135, %136 : vector<16x1xf32>
    %138 = vector.broadcast %137 : vector<16x1xf32> to vector<16x32xf32>
    %139 = arith.subf %131, %138 : vector<16x32xf32>
    %140 = vector.broadcast %137 : vector<16x1xf32> to vector<16x32xf32>
    %141 = arith.subf %131, %140 : vector<16x32xf32>
    %142 = arith.mulf %139, %141 : vector<16x32xf32>
    %cst_60 = arith.constant dense<0.000000e+00> : vector<16xf32>
    %143 = vector.multi_reduction <add>, %142, %cst_60 [1] : vector<16x32xf32> to vector<16xf32>
    %144 = vector.shape_cast %143 : vector<16xf32> to vector<16x1xf32>
    %cst_61 = arith.constant 3.200000e+01 : f32
    %145 = vector.broadcast %cst_61 : f32 to vector<16x1xf32>
    %146 = arith.divf %144, %145 : vector<16x1xf32>
    %147 = vector.broadcast %137 : vector<16x1xf32> to vector<16x32xf32>
    %148 = arith.subf %131, %147 : vector<16x32xf32>
    %cst_62 = arith.constant 9.99999996E-13 : f32
    %149 = vector.broadcast %cst_62 : f32 to vector<16x1xf32>
    %150 = arith.addf %146, %149 : vector<16x1xf32>
    %151 = math.rsqrt %150 : vector<16x1xf32>
    %152 = vector.broadcast %151 : vector<16x1xf32> to vector<16x32xf32>
    %153 = arith.mulf %148, %152 : vector<16x32xf32>
    %154 = vector.broadcast %132 : vector<1x32xf32> to vector<16x32xf32>
    %155 = arith.mulf %153, %154 : vector<16x32xf32>
    %156 = vector.broadcast %133 : vector<1x32xf32> to vector<16x32xf32>
    %157 = arith.addf %155, %156 : vector<16x32xf32>
    %c0_63 = arith.constant 0 : index
    %c0_64 = arith.constant 0 : index
    %c0_65 = arith.constant 0 : index
    %158 = vector.load %arg7[%c0_63, %c0_64, %c0_65] : memref<2x32x64xf32, #tpu.memory_space<vmem>>, vector<1x32x64xf32>
    %159 = vector.shape_cast %158 : vector<1x32x64xf32> to vector<32x64xf32>
    %cst_66 = arith.constant dense<0.000000e+00> : vector<16x64xf32>
    %160 = tpu.matmul %157, %159, %cst_66 {dimension_numbers = #tpu.dot_dimension_numbers<[1], [0], [0], [1], [0, 0, 1, 1], [], []>} : vector<16x32xf32>, vector<32x64xf32>, vector<16x64xf32> -> vector<16x64xf32>
    %c9 = arith.constant 9 : index
    %c0_67 = arith.constant 0 : index
    %161 = vector.load %arg10[%c9, %c0_67] : memref<23x128xf32, #tpu.memory_space<vmem>>, vector<1x64xf32>
    %162 = vector.broadcast %161 : vector<1x64xf32> to vector<16x64xf32>
    %163 = arith.addf %160, %162 : vector<16x64xf32>
    %cst_68 = arith.constant 5.000000e-01 : f32
    %164 = vector.broadcast %cst_68 : f32 to vector<16x64xf32>
    %165 = arith.mulf %164, %163 : vector<16x64xf32>
    %cst_69 = arith.constant 4.471500e-02 : f32
    %166 = vector.broadcast %cst_69 : f32 to vector<16x64xf32>
    %167 = arith.mulf %166, %163 : vector<16x64xf32>
    %168 = arith.mulf %167, %163 : vector<16x64xf32>
    %169 = arith.mulf %168, %163 : vector<16x64xf32>
    %170 = arith.addf %163, %169 : vector<16x64xf32>
    %cst_70 = arith.constant 0.797884583 : f32
    %171 = vector.broadcast %cst_70 : f32 to vector<16x64xf32>
    %172 = arith.mulf %171, %170 : vector<16x64xf32>
    %173 = math.tanh %172 : vector<16x64xf32>
    %cst_71 = arith.constant 1.000000e+00 : f32
    %174 = vector.broadcast %cst_71 : f32 to vector<16x64xf32>
    %175 = arith.addf %174, %173 : vector<16x64xf32>
    %176 = arith.mulf %165, %175 : vector<16x64xf32>
    %c0_72 = arith.constant 0 : index
    %c0_73 = arith.constant 0 : index
    %c0_74 = arith.constant 0 : index
    %177 = vector.load %arg8[%c0_72, %c0_73, %c0_74] : memref<2x64x32xf32, #tpu.memory_space<vmem>>, vector<1x64x32xf32>
    %178 = vector.shape_cast %177 : vector<1x64x32xf32> to vector<64x32xf32>
    %cst_75 = arith.constant dense<0.000000e+00> : vector<16x32xf32>
    %179 = tpu.matmul %176, %178, %cst_75 {dimension_numbers = #tpu.dot_dimension_numbers<[1], [0], [0], [1], [0, 0, 1, 1], [], []>} : vector<16x64xf32>, vector<64x32xf32>, vector<16x32xf32> -> vector<16x32xf32>
    %c10 = arith.constant 10 : index
    %c0_76 = arith.constant 0 : index
    %180 = vector.load %arg10[%c10, %c0_76] : memref<23x128xf32, #tpu.memory_space<vmem>>, vector<1x32xf32>
    %181 = vector.broadcast %180 : vector<1x32xf32> to vector<16x32xf32>
    %182 = arith.addf %179, %181 : vector<16x32xf32>
    %183 = arith.addf %182, %157 : vector<16x32xf32>
    %c11 = arith.constant 11 : index
    %c0_77 = arith.constant 0 : index
    %184 = vector.load %arg10[%c11, %c0_77] : memref<23x128xf32, #tpu.memory_space<vmem>>, vector<1x32xf32>
    %c12 = arith.constant 12 : index
    %c0_78 = arith.constant 0 : index
    %185 = vector.load %arg10[%c12, %c0_78] : memref<23x128xf32, #tpu.memory_space<vmem>>, vector<1x32xf32>
    %cst_79 = arith.constant dense<0.000000e+00> : vector<16xf32>
    %186 = vector.multi_reduction <add>, %183, %cst_79 [1] : vector<16x32xf32> to vector<16xf32>
    %187 = vector.shape_cast %186 : vector<16xf32> to vector<16x1xf32>
    %cst_80 = arith.constant 3.200000e+01 : f32
    %188 = vector.broadcast %cst_80 : f32 to vector<16x1xf32>
    %189 = arith.divf %187, %188 : vector<16x1xf32>
    %190 = vector.broadcast %189 : vector<16x1xf32> to vector<16x32xf32>
    %191 = arith.subf %183, %190 : vector<16x32xf32>
    %192 = vector.broadcast %189 : vector<16x1xf32> to vector<16x32xf32>
    %193 = arith.subf %183, %192 : vector<16x32xf32>
    %194 = arith.mulf %191, %193 : vector<16x32xf32>
    %cst_81 = arith.constant dense<0.000000e+00> : vector<16xf32>
    %195 = vector.multi_reduction <add>, %194, %cst_81 [1] : vector<16x32xf32> to vector<16xf32>
    %196 = vector.shape_cast %195 : vector<16xf32> to vector<16x1xf32>
    %cst_82 = arith.constant 3.200000e+01 : f32
    %197 = vector.broadcast %cst_82 : f32 to vector<16x1xf32>
    %198 = arith.divf %196, %197 : vector<16x1xf32>
    %199 = vector.broadcast %189 : vector<16x1xf32> to vector<16x32xf32>
    %200 = arith.subf %183, %199 : vector<16x32xf32>
    %cst_83 = arith.constant 9.99999996E-13 : f32
    %201 = vector.broadcast %cst_83 : f32 to vector<16x1xf32>
    %202 = arith.addf %198, %201 : vector<16x1xf32>
    %203 = math.rsqrt %202 : vector<16x1xf32>
    %204 = vector.broadcast %203 : vector<16x1xf32> to vector<16x32xf32>
    %205 = arith.mulf %200, %204 : vector<16x32xf32>
    %206 = vector.broadcast %184 : vector<1x32xf32> to vector<16x32xf32>
    %207 = arith.mulf %205, %206 : vector<16x32xf32>
    %208 = vector.broadcast %185 : vector<1x32xf32> to vector<16x32xf32>
    %209 = arith.addf %207, %208 : vector<16x32xf32>
    %c0_84 = arith.constant 0 : index
    %c0_85 = arith.constant 0 : index
    %210 = vector.load %arg12[%c0_84, %c0_85] : memref<16x32xf32, #tpu.memory_space<vmem>>, vector<16x32xf32>
    tpu.vector_store %arg12[%c0_84, %c0_85], %209 {strides = array<i32>} : memref<16x32xf32, #tpu.memory_space<vmem>>, vector<16x32xf32>,
    %c0_86 = arith.constant 0 : index
    %c0_87 = arith.constant 0 : index
    %211 = vector.load %arg12[%c0_86, %c0_87] : memref<16x32xf32, #tpu.memory_space<vmem>>, vector<16x32xf32>
    %c1_88 = arith.constant 1 : index
    %c0_89 = arith.constant 0 : index
    %c0_90 = arith.constant 0 : index
    %212 = vector.load %arg3[%c1_88, %c0_89, %c0_90] : memref<2x32x32xf32, #tpu.memory_space<vmem>>, vector<1x32x32xf32>
    %213 = vector.shape_cast %212 : vector<1x32x32xf32> to vector<32x32xf32>
    %c1_91 = arith.constant 1 : index
    %c0_92 = arith.constant 0 : index
    %c0_93 = arith.constant 0 : index
    %214 = vector.load %arg4[%c1_91, %c0_92, %c0_93] : memref<2x32x32xf32, #tpu.memory_space<vmem>>, vector<1x32x32xf32>
    %215 = vector.shape_cast %214 : vector<1x32x32xf32> to vector<32x32xf32>
    %c1_94 = arith.constant 1 : index
    %c0_95 = arith.constant 0 : index
    %c0_96 = arith.constant 0 : index
    %216 = vector.load %arg5[%c1_94, %c0_95, %c0_96] : memref<2x32x32xf32, #tpu.memory_space<vmem>>, vector<1x32x32xf32>
    %217 = vector.shape_cast %216 : vector<1x32x32xf32> to vector<32x32xf32>
    %c1_97 = arith.constant 1 : index
    %c0_98 = arith.constant 0 : index
    %c0_99 = arith.constant 0 : index
    %218 = vector.load %arg6[%c1_97, %c0_98, %c0_99] : memref<2x32x32xf32, #tpu.memory_space<vmem>>, vector<1x32x32xf32>
    %219 = vector.shape_cast %218 : vector<1x32x32xf32> to vector<32x32xf32>
    %cst_100 = arith.constant dense<0.000000e+00> : vector<16x32xf32>
    %220 = tpu.matmul %211, %213, %cst_100 {dimension_numbers = #tpu.dot_dimension_numbers<[1], [0], [0], [1], [0, 0, 1, 1], [], []>} : vector<16x32xf32>, vector<32x32xf32>, vector<16x32xf32> -> vector<16x32xf32>
    %c13 = arith.constant 13 : index
    %c0_101 = arith.constant 0 : index
    %221 = vector.load %arg10[%c13, %c0_101] : memref<23x128xf32, #tpu.memory_space<vmem>>, vector<1x32xf32>
    %222 = vector.broadcast %221 : vector<1x32xf32> to vector<16x32xf32>
    %223 = arith.addf %220, %222 : vector<16x32xf32>
    %cst_102 = arith.constant 2.500000e-01 : f32
    %224 = vector.broadcast %cst_102 : f32 to vector<16x32xf32>
    %225 = arith.mulf %223, %224 : vector<16x32xf32>
    %cst_103 = arith.constant dense<0.000000e+00> : vector<16x32xf32>
    %226 = tpu.matmul %211, %215, %cst_103 {dimension_numbers = #tpu.dot_dimension_numbers<[1], [0], [0], [1], [0, 0, 1, 1], [], []>} : vector<16x32xf32>, vector<32x32xf32>, vector<16x32xf32> -> vector<16x32xf32>
    %c14 = arith.constant 14 : index
    %c0_104 = arith.constant 0 : index
    %227 = vector.load %arg10[%c14, %c0_104] : memref<23x128xf32, #tpu.memory_space<vmem>>, vector<1x32xf32>
    %228 = vector.broadcast %227 : vector<1x32xf32> to vector<16x32xf32>
    %229 = arith.addf %226, %228 : vector<16x32xf32>
    %cst_105 = arith.constant dense<0.000000e+00> : vector<16x32xf32>
    %230 = tpu.matmul %211, %217, %cst_105 {dimension_numbers = #tpu.dot_dimension_numbers<[1], [0], [0], [1], [0, 0, 1, 1], [], []>} : vector<16x32xf32>, vector<32x32xf32>, vector<16x32xf32> -> vector<16x32xf32>
    %c15 = arith.constant 15 : index
    %c0_106 = arith.constant 0 : index
    %231 = vector.load %arg10[%c15, %c0_106] : memref<23x128xf32, #tpu.memory_space<vmem>>, vector<1x32xf32>
    %232 = vector.broadcast %231 : vector<1x32xf32> to vector<16x32xf32>
    %233 = arith.addf %230, %232 : vector<16x32xf32>
    %c0_107 = arith.constant 0 : index
    %c0_108 = arith.constant 0 : index
    %234 = vector.load %arg2[%c0_107, %c0_108] : memref<2x8xf32, #tpu.memory_space<vmem>>, vector<1x8xf32>
    %235 = vector.extract_strided_slice %225 {offsets = [0, 0], sizes = [8, 16], strides = [1, 1]} : vector<16x32xf32> to vector<8x16xf32>
    %236 = vector.extract_strided_slice %229 {offsets = [0, 0], sizes = [8, 16], strides = [1, 1]} : vector<16x32xf32> to vector<8x16xf32>
    %237 = vector.extract_strided_slice %233 {offsets = [0, 0], sizes = [8, 16], strides = [1, 1]} : vector<16x32xf32> to vector<8x16xf32>
    "tpu.trace_start"() <{level = 10 : i32, message = "qd,kd->qk"}> : () -> ()
    %cst_109 = arith.constant dense<0.000000e+00> : vector<8x8xf32>
    %238 = tpu.matmul %235, %236, %cst_109 {dimension_numbers = #tpu.dot_dimension_numbers<[1], [1], [0], [0], [0, 0, 1, 0], [], []>} : vector<8x16xf32>, vector<8x16xf32>, vector<8x8xf32> -> vector<8x8xf32>
    "tpu.trace_stop"() : () -> ()
    %239 = vector.broadcast %234 : vector<1x8xf32> to vector<8x8xf32>
    %240 = arith.addf %238, %239 : vector<8x8xf32>
    %cst_110 = arith.constant dense<0xFF800000> : vector<8xf32>
    %241 = vector.multi_reduction <maximumf>, %240, %cst_110 [1] : vector<8x8xf32> to vector<8xf32>
    %242 = vector.shape_cast %241 : vector<8xf32> to vector<8x1xf32>
    %243 = vector.broadcast %242 : vector<8x1xf32> to vector<8x8xf32>
    %244 = arith.subf %240, %243 : vector<8x8xf32>
    %245 = math.exp %244 : vector<8x8xf32>
    %cst_111 = arith.constant dense<0.000000e+00> : vector<8xf32>
    %246 = vector.multi_reduction <add>, %245, %cst_111 [1] : vector<8x8xf32> to vector<8xf32>
    %247 = vector.shape_cast %246 : vector<8xf32> to vector<8x1xf32>
    %248 = vector.broadcast %247 : vector<8x1xf32> to vector<8x8xf32>
    %249 = arith.divf %245, %248 : vector<8x8xf32>
    %cst_112 = arith.constant dense<0.000000e+00> : vector<8x16xf32>
    %250 = tpu.matmul %249, %237, %cst_112 {dimension_numbers = #tpu.dot_dimension_numbers<[1], [0], [0], [1], [0, 0, 1, 1], [], []>} : vector<8x8xf32>, vector<8x16xf32>, vector<8x16xf32> -> vector<8x16xf32>
    %251 = vector.extract_strided_slice %219 {offsets = [0, 0], sizes = [16, 32], strides = [1, 1]} : vector<32x32xf32> to vector<16x32xf32>
    %cst_113 = arith.constant dense<0.000000e+00> : vector<8x32xf32>
    %252 = tpu.matmul %250, %251, %cst_113 {dimension_numbers = #tpu.dot_dimension_numbers<[1], [0], [0], [1], [0, 0, 1, 1], [], []>} : vector<8x16xf32>, vector<16x32xf32>, vector<8x32xf32> -> vector<8x32xf32>
    %253 = vector.extract_strided_slice %225 {offsets = [0, 16], sizes = [8, 16], strides = [1, 1]} : vector<16x32xf32> to vector<8x16xf32>
    %254 = vector.extract_strided_slice %229 {offsets = [0, 16], sizes = [8, 16], strides = [1, 1]} : vector<16x32xf32> to vector<8x16xf32>
    %255 = vector.extract_strided_slice %233 {offsets = [0, 16], sizes = [8, 16], strides = [1, 1]} : vector<16x32xf32> to vector<8x16xf32>
    "tpu.trace_start"() <{level = 10 : i32, message = "qd,kd->qk"}> : () -> ()
    %cst_114 = arith.constant dense<0.000000e+00> : vector<8x8xf32>
    %256 = tpu.matmul %253, %254, %cst_114 {dimension_numbers = #tpu.dot_dimension_numbers<[1], [1], [0], [0], [0, 0, 1, 0], [], []>} : vector<8x16xf32>, vector<8x16xf32>, vector<8x8xf32> -> vector<8x8xf32>
    "tpu.trace_stop"() : () -> ()
    %257 = vector.broadcast %234 : vector<1x8xf32> to vector<8x8xf32>
    %258 = arith.addf %256, %257 : vector<8x8xf32>
    %cst_115 = arith.constant dense<0xFF800000> : vector<8xf32>
    %259 = vector.multi_reduction <maximumf>, %258, %cst_115 [1] : vector<8x8xf32> to vector<8xf32>
    %260 = vector.shape_cast %259 : vector<8xf32> to vector<8x1xf32>
    %261 = vector.broadcast %260 : vector<8x1xf32> to vector<8x8xf32>
    %262 = arith.subf %258, %261 : vector<8x8xf32>
    %263 = math.exp %262 : vector<8x8xf32>
    %cst_116 = arith.constant dense<0.000000e+00> : vector<8xf32>
    %264 = vector.multi_reduction <add>, %263, %cst_116 [1] : vector<8x8xf32> to vector<8xf32>
    %265 = vector.shape_cast %264 : vector<8xf32> to vector<8x1xf32>
    %266 = vector.broadcast %265 : vector<8x1xf32> to vector<8x8xf32>
    %267 = arith.divf %263, %266 : vector<8x8xf32>
    %cst_117 = arith.constant dense<0.000000e+00> : vector<8x16xf32>
    %268 = tpu.matmul %267, %255, %cst_117 {dimension_numbers = #tpu.dot_dimension_numbers<[1], [0], [0], [1], [0, 0, 1, 1], [], []>} : vector<8x8xf32>, vector<8x16xf32>, vector<8x16xf32> -> vector<8x16xf32>
    %269 = vector.extract_strided_slice %219 {offsets = [16, 0], sizes = [16, 32], strides = [1, 1]} : vector<32x32xf32> to vector<16x32xf32>
    %cst_118 = arith.constant dense<0.000000e+00> : vector<8x32xf32>
    %270 = tpu.matmul %268, %269, %cst_118 {dimension_numbers = #tpu.dot_dimension_numbers<[1], [0], [0], [1], [0, 0, 1, 1], [], []>} : vector<8x16xf32>, vector<16x32xf32>, vector<8x32xf32> -> vector<8x32xf32>
    %271 = arith.addf %252, %270 : vector<8x32xf32>
    %c1_119 = arith.constant 1 : index
    %c0_120 = arith.constant 0 : index
    %272 = vector.load %arg2[%c1_119, %c0_120] : memref<2x8xf32, #tpu.memory_space<vmem>>, vector<1x8xf32>
    %273 = vector.extract_strided_slice %225 {offsets = [8, 0], sizes = [8, 16], strides = [1, 1]} : vector<16x32xf32> to vector<8x16xf32>
    %274 = vector.extract_strided_slice %229 {offsets = [8, 0], sizes = [8, 16], strides = [1, 1]} : vector<16x32xf32> to vector<8x16xf32>
    %275 = vector.extract_strided_slice %233 {offsets = [8, 0], sizes = [8, 16], strides = [1, 1]} : vector<16x32xf32> to vector<8x16xf32>
    "tpu.trace_start"() <{level = 10 : i32, message = "qd,kd->qk"}> : () -> ()
    %cst_121 = arith.constant dense<0.000000e+00> : vector<8x8xf32>
    %276 = tpu.matmul %273, %274, %cst_121 {dimension_numbers = #tpu.dot_dimension_numbers<[1], [1], [0], [0], [0, 0, 1, 0], [], []>} : vector<8x16xf32>, vector<8x16xf32>, vector<8x8xf32> -> vector<8x8xf32>
    "tpu.trace_stop"() : () -> ()
    %277 = vector.broadcast %272 : vector<1x8xf32> to vector<8x8xf32>
    %278 = arith.addf %276, %277 : vector<8x8xf32>
    %cst_122 = arith.constant dense<0xFF800000> : vector<8xf32>
    %279 = vector.multi_reduction <maximumf>, %278, %cst_122 [1] : vector<8x8xf32> to vector<8xf32>
    %280 = vector.shape_cast %279 : vector<8xf32> to vector<8x1xf32>
    %281 = vector.broadcast %280 : vector<8x1xf32> to vector<8x8xf32>
    %282 = arith.subf %278, %281 : vector<8x8xf32>
    %283 = math.exp %282 : vector<8x8xf32>
    %cst_123 = arith.constant dense<0.000000e+00> : vector<8xf32>
    %284 = vector.multi_reduction <add>, %283, %cst_123 [1] : vector<8x8xf32> to vector<8xf32>
    %285 = vector.shape_cast %284 : vector<8xf32> to vector<8x1xf32>
    %286 = vector.broadcast %285 : vector<8x1xf32> to vector<8x8xf32>
    %287 = arith.divf %283, %286 : vector<8x8xf32>
    %cst_124 = arith.constant dense<0.000000e+00> : vector<8x16xf32>
    %288 = tpu.matmul %287, %275, %cst_124 {dimension_numbers = #tpu.dot_dimension_numbers<[1], [0], [0], [1], [0, 0, 1, 1], [], []>} : vector<8x8xf32>, vector<8x16xf32>, vector<8x16xf32> -> vector<8x16xf32>
    %289 = vector.extract_strided_slice %219 {offsets = [0, 0], sizes = [16, 32], strides = [1, 1]} : vector<32x32xf32> to vector<16x32xf32>
    %cst_125 = arith.constant dense<0.000000e+00> : vector<8x32xf32>
    %290 = tpu.matmul %288, %289, %cst_125 {dimension_numbers = #tpu.dot_dimension_numbers<[1], [0], [0], [1], [0, 0, 1, 1], [], []>} : vector<8x16xf32>, vector<16x32xf32>, vector<8x32xf32> -> vector<8x32xf32>
    %291 = vector.extract_strided_slice %225 {offsets = [8, 16], sizes = [8, 16], strides = [1, 1]} : vector<16x32xf32> to vector<8x16xf32>
    %292 = vector.extract_strided_slice %229 {offsets = [8, 16], sizes = [8, 16], strides = [1, 1]} : vector<16x32xf32> to vector<8x16xf32>
    %293 = vector.extract_strided_slice %233 {offsets = [8, 16], sizes = [8, 16], strides = [1, 1]} : vector<16x32xf32> to vector<8x16xf32>
    "tpu.trace_start"() <{level = 10 : i32, message = "qd,kd->qk"}> : () -> ()
    %cst_126 = arith.constant dense<0.000000e+00> : vector<8x8xf32>
    %294 = tpu.matmul %291, %292, %cst_126 {dimension_numbers = #tpu.dot_dimension_numbers<[1], [1], [0], [0], [0, 0, 1, 0], [], []>} : vector<8x16xf32>, vector<8x16xf32>, vector<8x8xf32> -> vector<8x8xf32>
    "tpu.trace_stop"() : () -> ()
    %295 = vector.broadcast %272 : vector<1x8xf32> to vector<8x8xf32>
    %296 = arith.addf %294, %295 : vector<8x8xf32>
    %cst_127 = arith.constant dense<0xFF800000> : vector<8xf32>
    %297 = vector.multi_reduction <maximumf>, %296, %cst_127 [1] : vector<8x8xf32> to vector<8xf32>
    %298 = vector.shape_cast %297 : vector<8xf32> to vector<8x1xf32>
    %299 = vector.broadcast %298 : vector<8x1xf32> to vector<8x8xf32>
    %300 = arith.subf %296, %299 : vector<8x8xf32>
    %301 = math.exp %300 : vector<8x8xf32>
    %cst_128 = arith.constant dense<0.000000e+00> : vector<8xf32>
    %302 = vector.multi_reduction <add>, %301, %cst_128 [1] : vector<8x8xf32> to vector<8xf32>
    %303 = vector.shape_cast %302 : vector<8xf32> to vector<8x1xf32>
    %304 = vector.broadcast %303 : vector<8x1xf32> to vector<8x8xf32>
    %305 = arith.divf %301, %304 : vector<8x8xf32>
    %cst_129 = arith.constant dense<0.000000e+00> : vector<8x16xf32>
    %306 = tpu.matmul %305, %293, %cst_129 {dimension_numbers = #tpu.dot_dimension_numbers<[1], [0], [0], [1], [0, 0, 1, 1], [], []>} : vector<8x8xf32>, vector<8x16xf32>, vector<8x16xf32> -> vector<8x16xf32>
    %307 = vector.extract_strided_slice %219 {offsets = [16, 0], sizes = [16, 32], strides = [1, 1]} : vector<32x32xf32> to vector<16x32xf32>
    %cst_130 = arith.constant dense<0.000000e+00> : vector<8x32xf32>
    %308 = tpu.matmul %306, %307, %cst_130 {dimension_numbers = #tpu.dot_dimension_numbers<[1], [0], [0], [1], [0, 0, 1, 1], [], []>} : vector<8x16xf32>, vector<16x32xf32>, vector<8x32xf32> -> vector<8x32xf32>
    %309 = arith.addf %290, %308 : vector<8x32xf32>
    %310 = tpu.concatenate %271, %309 in 0 : vector<8x32xf32>, vector<8x32xf32> -> vector<16x32xf32>
    %c16 = arith.constant 16 : index
    %c0_131 = arith.constant 0 : index
    %311 = vector.load %arg10[%c16, %c0_131] : memref<23x128xf32, #tpu.memory_space<vmem>>, vector<1x32xf32>
    %312 = vector.broadcast %311 : vector<1x32xf32> to vector<16x32xf32>
    %313 = arith.addf %310, %312 : vector<16x32xf32>
    %314 = arith.addf %313, %211 : vector<16x32xf32>
    %c17 = arith.constant 17 : index
    %c0_132 = arith.constant 0 : index
    %315 = vector.load %arg10[%c17, %c0_132] : memref<23x128xf32, #tpu.memory_space<vmem>>, vector<1x32xf32>
    %c18 = arith.constant 18 : index
    %c0_133 = arith.constant 0 : index
    %316 = vector.load %arg10[%c18, %c0_133] : memref<23x128xf32, #tpu.memory_space<vmem>>, vector<1x32xf32>
    %cst_134 = arith.constant dense<0.000000e+00> : vector<16xf32>
    %317 = vector.multi_reduction <add>, %314, %cst_134 [1] : vector<16x32xf32> to vector<16xf32>
    %318 = vector.shape_cast %317 : vector<16xf32> to vector<16x1xf32>
    %cst_135 = arith.constant 3.200000e+01 : f32
    %319 = vector.broadcast %cst_135 : f32 to vector<16x1xf32>
    %320 = arith.divf %318, %319 : vector<16x1xf32>
    %321 = vector.broadcast %320 : vector<16x1xf32> to vector<16x32xf32>
    %322 = arith.subf %314, %321 : vector<16x32xf32>
    %323 = vector.broadcast %320 : vector<16x1xf32> to vector<16x32xf32>
    %324 = arith.subf %314, %323 : vector<16x32xf32>
    %325 = arith.mulf %322, %324 : vector<16x32xf32>
    %cst_136 = arith.constant dense<0.000000e+00> : vector<16xf32>
    %326 = vector.multi_reduction <add>, %325, %cst_136 [1] : vector<16x32xf32> to vector<16xf32>
    %327 = vector.shape_cast %326 : vector<16xf32> to vector<16x1xf32>
    %cst_137 = arith.constant 3.200000e+01 : f32
    %328 = vector.broadcast %cst_137 : f32 to vector<16x1xf32>
    %329 = arith.divf %327, %328 : vector<16x1xf32>
    %330 = vector.broadcast %320 : vector<16x1xf32> to vector<16x32xf32>
    %331 = arith.subf %314, %330 : vector<16x32xf32>
    %cst_138 = arith.constant 9.99999996E-13 : f32
    %332 = vector.broadcast %cst_138 : f32 to vector<16x1xf32>
    %333 = arith.addf %329, %332 : vector<16x1xf32>
    %334 = math.rsqrt %333 : vector<16x1xf32>
    %335 = vector.broadcast %334 : vector<16x1xf32> to vector<16x32xf32>
    %336 = arith.mulf %331, %335 : vector<16x32xf32>
    %337 = vector.broadcast %315 : vector<1x32xf32> to vector<16x32xf32>
    %338 = arith.mulf %336, %337 : vector<16x32xf32>
    %339 = vector.broadcast %316 : vector<1x32xf32> to vector<16x32xf32>
    %340 = arith.addf %338, %339 : vector<16x32xf32>
    %c1_139 = arith.constant 1 : index
    %c0_140 = arith.constant 0 : index
    %c0_141 = arith.constant 0 : index
    %341 = vector.load %arg7[%c1_139, %c0_140, %c0_141] : memref<2x32x64xf32, #tpu.memory_space<vmem>>, vector<1x32x64xf32>
    %342 = vector.shape_cast %341 : vector<1x32x64xf32> to vector<32x64xf32>
    %cst_142 = arith.constant dense<0.000000e+00> : vector<16x64xf32>
    %343 = tpu.matmul %340, %342, %cst_142 {dimension_numbers = #tpu.dot_dimension_numbers<[1], [0], [0], [1], [0, 0, 1, 1], [], []>} : vector<16x32xf32>, vector<32x64xf32>, vector<16x64xf32> -> vector<16x64xf32>
    %c19 = arith.constant 19 : index
    %c0_143 = arith.constant 0 : index
    %344 = vector.load %arg10[%c19, %c0_143] : memref<23x128xf32, #tpu.memory_space<vmem>>, vector<1x64xf32>
    %345 = vector.broadcast %344 : vector<1x64xf32> to vector<16x64xf32>
    %346 = arith.addf %343, %345 : vector<16x64xf32>
    %cst_144 = arith.constant 5.000000e-01 : f32
    %347 = vector.broadcast %cst_144 : f32 to vector<16x64xf32>
    %348 = arith.mulf %347, %346 : vector<16x64xf32>
    %cst_145 = arith.constant 4.471500e-02 : f32
    %349 = vector.broadcast %cst_145 : f32 to vector<16x64xf32>
    %350 = arith.mulf %349, %346 : vector<16x64xf32>
    %351 = arith.mulf %350, %346 : vector<16x64xf32>
    %352 = arith.mulf %351, %346 : vector<16x64xf32>
    %353 = arith.addf %346, %352 : vector<16x64xf32>
    %cst_146 = arith.constant 0.797884583 : f32
    %354 = vector.broadcast %cst_146 : f32 to vector<16x64xf32>
    %355 = arith.mulf %354, %353 : vector<16x64xf32>
    %356 = math.tanh %355 : vector<16x64xf32>
    %cst_147 = arith.constant 1.000000e+00 : f32
    %357 = vector.broadcast %cst_147 : f32 to vector<16x64xf32>
    %358 = arith.addf %357, %356 : vector<16x64xf32>
    %359 = arith.mulf %348, %358 : vector<16x64xf32>
    %c1_148 = arith.constant 1 : index
    %c0_149 = arith.constant 0 : index
    %c0_150 = arith.constant 0 : index
    %360 = vector.load %arg8[%c1_148, %c0_149, %c0_150] : memref<2x64x32xf32, #tpu.memory_space<vmem>>, vector<1x64x32xf32>
    %361 = vector.shape_cast %360 : vector<1x64x32xf32> to vector<64x32xf32>
    %cst_151 = arith.constant dense<0.000000e+00> : vector<16x32xf32>
    %362 = tpu.matmul %359, %361, %cst_151 {dimension_numbers = #tpu.dot_dimension_numbers<[1], [0], [0], [1], [0, 0, 1, 1], [], []>} : vector<16x64xf32>, vector<64x32xf32>, vector<16x32xf32> -> vector<16x32xf32>
    %c20 = arith.constant 20 : index
    %c0_152 = arith.constant 0 : index
    %363 = vector.load %arg10[%c20, %c0_152] : memref<23x128xf32, #tpu.memory_space<vmem>>, vector<1x32xf32>
    %364 = vector.broadcast %363 : vector<1x32xf32> to vector<16x32xf32>
    %365 = arith.addf %362, %364 : vector<16x32xf32>
    %366 = arith.addf %365, %340 : vector<16x32xf32>
    %c21 = arith.constant 21 : index
    %c0_153 = arith.constant 0 : index
    %367 = vector.load %arg10[%c21, %c0_153] : memref<23x128xf32, #tpu.memory_space<vmem>>, vector<1x32xf32>
    %c22 = arith.constant 22 : index
    %c0_154 = arith.constant 0 : index
    %368 = vector.load %arg10[%c22, %c0_154] : memref<23x128xf32, #tpu.memory_space<vmem>>, vector<1x32xf32>
    %cst_155 = arith.constant dense<0.000000e+00> : vector<16xf32>
    %369 = vector.multi_reduction <add>, %366, %cst_155 [1] : vector<16x32xf32> to vector<16xf32>
    %370 = vector.shape_cast %369 : vector<16xf32> to vector<16x1xf32>
    %cst_156 = arith.constant 3.200000e+01 : f32
    %371 = vector.broadcast %cst_156 : f32 to vector<16x1xf32>
    %372 = arith.divf %370, %371 : vector<16x1xf32>
    %373 = vector.broadcast %372 : vector<16x1xf32> to vector<16x32xf32>
    %374 = arith.subf %366, %373 : vector<16x32xf32>
    %375 = vector.broadcast %372 : vector<16x1xf32> to vector<16x32xf32>
    %376 = arith.subf %366, %375 : vector<16x32xf32>
    %377 = arith.mulf %374, %376 : vector<16x32xf32>
    %cst_157 = arith.constant dense<0.000000e+00> : vector<16xf32>
    %378 = vector.multi_reduction <add>, %377, %cst_157 [1] : vector<16x32xf32> to vector<16xf32>
    %379 = vector.shape_cast %378 : vector<16xf32> to vector<16x1xf32>
    %cst_158 = arith.constant 3.200000e+01 : f32
    %380 = vector.broadcast %cst_158 : f32 to vector<16x1xf32>
    %381 = arith.divf %379, %380 : vector<16x1xf32>
    %382 = vector.broadcast %372 : vector<16x1xf32> to vector<16x32xf32>
    %383 = arith.subf %366, %382 : vector<16x32xf32>
    %cst_159 = arith.constant 9.99999996E-13 : f32
    %384 = vector.broadcast %cst_159 : f32 to vector<16x1xf32>
    %385 = arith.addf %381, %384 : vector<16x1xf32>
    %386 = math.rsqrt %385 : vector<16x1xf32>
    %387 = vector.broadcast %386 : vector<16x1xf32> to vector<16x32xf32>
    %388 = arith.mulf %383, %387 : vector<16x32xf32>
    %389 = vector.broadcast %367 : vector<1x32xf32> to vector<16x32xf32>
    %390 = arith.mulf %388, %389 : vector<16x32xf32>
    %391 = vector.broadcast %368 : vector<1x32xf32> to vector<16x32xf32>
    %392 = arith.addf %390, %391 : vector<16x32xf32>
    %c0_160 = arith.constant 0 : index
    %c0_161 = arith.constant 0 : index
    %393 = vector.load %arg12[%c0_160, %c0_161] : memref<16x32xf32, #tpu.memory_space<vmem>>, vector<16x32xf32>
    tpu.vector_store %arg12[%c0_160, %c0_161], %392 {strides = array<i32>} : memref<16x32xf32, #tpu.memory_space<vmem>>, vector<16x32xf32>,
    %c0_162 = arith.constant 0 : index
    %c0_163 = arith.constant 0 : index
    %394 = vector.load %arg12[%c0_162, %c0_163] : memref<16x32xf32, #tpu.memory_space<vmem>>, vector<16x32xf32>
    %c0_164 = arith.constant 0 : index
    %c0_165 = arith.constant 0 : index
    %395 = vector.load %arg9[%c0_164, %c0_165] : memref<32x128xf32, #tpu.memory_space<vmem>>, vector<32x128xf32>
    %cst_166 = arith.constant dense<0.000000e+00> : vector<16x128xf32>
    %396 = tpu.matmul %394, %395, %cst_166 {dimension_numbers = #tpu.dot_dimension_numbers<[1], [0], [0], [1], [0, 0, 1, 1], [], []>} : vector<16x32xf32>, vector<32x128xf32>, vector<16x128xf32> -> vector<16x128xf32>
    %c2 = arith.constant 2 : index
    %c0_167 = arith.constant 0 : index
    %397 = vector.load %arg10[%c2, %c0_167] : memref<23x128xf32, #tpu.memory_space<vmem>>, vector<1x128xf32>
    %398 = vector.broadcast %397 : vector<1x128xf32> to vector<16x128xf32>
    %399 = arith.addf %396, %398 : vector<16x128xf32>
    %c0_168 = arith.constant 0 : index
    %c0_169 = arith.constant 0 : index
    %400 = vector.load %arg11[%c0_168, %c0_169] : memref<16x128xf32, #tpu.memory_space<vmem>>, vector<16x128xf32>
    tpu.vector_store %arg11[%c0_168, %c0_169], %399 {strides = array<i32>} : memref<16x128xf32, #tpu.memory_space<vmem>>, vector<16x128xf32>,
    return
  }
  func.func @transform_0(%arg0: i32) -> (i32, i32) {
    %c0_i32 = arith.constant 0 : i32
    %c0_i32_0 = arith.constant 0 : i32
    %c0_i32_1 = arith.constant 0 : i32
    return %c0_i32, %c0_i32_0 : i32, i32
  }
  func.func @transform_1(%arg0: i32) -> (i32, i32) {
    %c0_i32 = arith.constant 0 : i32
    %c0_i32_0 = arith.constant 0 : i32
    %c0_i32_1 = arith.constant 0 : i32
    return %c0_i32, %c0_i32_0 : i32, i32
  }
  func.func @transform_2(%arg0: i32) -> (i32, i32, i32) {
    %c0_i32 = arith.constant 0 : i32
    %c0_i32_0 = arith.constant 0 : i32
    %c0_i32_1 = arith.constant 0 : i32
    %c0_i32_2 = arith.constant 0 : i32
    return %c0_i32, %c0_i32_0, %c0_i32_1 : i32, i32, i32
  }
  func.func @transform_3(%arg0: i32) -> (i32, i32, i32) {
    %c0_i32 = arith.constant 0 : i32
    %c0_i32_0 = arith.constant 0 : i32
    %c0_i32_1 = arith.constant 0 : i32
    %c0_i32_2 = arith.constant 0 : i32
    return %c0_i32, %c0_i32_0, %c0_i32_1 : i32, i32, i32
  }
  func.func @transform_4(%arg0: i32) -> (i32, i32, i32) {
    %c0_i32 = arith.constant 0 : i32
    %c0_i32_0 = arith.constant 0 : i32
    %c0_i32_1 = arith.constant 0 : i32
    %c0_i32_2 = arith.constant 0 : i32
    return %c0_i32, %c0_i32_0, %c0_i32_1 : i32, i32, i32
  }
  func.func @transform_5(%arg0: i32) -> (i32, i32, i32) {
    %c0_i32 = arith.constant 0 : i32
    %c0_i32_0 = arith.constant 0 : i32
    %c0_i32_1 = arith.constant 0 : i32
    %c0_i32_2 = arith.constant 0 : i32
    return %c0_i32, %c0_i32_0, %c0_i32_1 : i32, i32, i32
  }
  func.func @transform_6(%arg0: i32) -> (i32, i32, i32) {
    %c0_i32 = arith.constant 0 : i32
    %c0_i32_0 = arith.constant 0 : i32
    %c0_i32_1 = arith.constant 0 : i32
    %c0_i32_2 = arith.constant 0 : i32
    return %c0_i32, %c0_i32_0, %c0_i32_1 : i32, i32, i32
  }
  func.func @transform_7(%arg0: i32) -> (i32, i32, i32) {
    %c0_i32 = arith.constant 0 : i32
    %c0_i32_0 = arith.constant 0 : i32
    %c0_i32_1 = arith.constant 0 : i32
    %c0_i32_2 = arith.constant 0 : i32
    return %c0_i32, %c0_i32_0, %c0_i32_1 : i32, i32, i32
  }
  func.func @transform_8(%arg0: i32) -> (i32, i32) {
    %c0_i32 = arith.constant 0 : i32
    %c0_i32_0 = arith.constant 0 : i32
    %c0_i32_1 = arith.constant 0 : i32
    return %c0_i32, %c0_i32_0 : i32, i32
  }
  func.func @transform_9(%arg0: i32) -> (i32, i32) {
    %c0_i32 = arith.constant 0 : i32
    %c0_i32_0 = arith.constant 0 : i32
    %c0_i32_1 = arith.constant 0 : i32
    return %c0_i32, %c0_i32_0 : i32, i32
  }
  func.func @transform_10(%arg0: i32) -> (i32, i32) {
    %c0_i32 = arith.constant 0 : i32
    %c0_i32_0 = arith.constant 0 : i32
    %c0_i32_1 = arith.constant 0 : i32
    return %c0_i32, %c0_i32_0 : i32, i32
  }
}

</mosaic_0001>

<llo_original>
// kernel: teacher_model_forward.1
$region0: #{teacher_model_forward.1}
  #allocation0 [shape = 'u32[]', space=smem, size = 0x4, offset = 0x4, fixed_abs, tag = 'smem constant byte address 0x4 - core index']
  #allocation1 [shape = 'u32[72,128]{1,0:T(1,128)}', space=vmem, size = 0x9000, scoped, tag = 'internal scratch']
  #allocation2 [shape = 'f32[16,32]{1,0:T(8,128)}', space=vmem, size = 0x2000, scoped, tag = 'scratch operand']
  %s0 = inlined_call_operand.vmem [shape: f32[16,32], index: 0, kind: input, shape index: {}]
  %s1 = inlined_call_operand.vmem [shape: f32[2,8], index: 1, kind: input, shape index: {}]
  %s2 = inlined_call_operand.vmem [shape: f32[2,32,32], index: 2, kind: input, shape index: {}]
  %s3 = inlined_call_operand.vmem [shape: f32[2,32,32], index: 3, kind: input, shape index: {}]
  %s4 = inlined_call_operand.vmem [shape: f32[2,32,32], index: 4, kind: input, shape index: {}]
  %s5 = inlined_call_operand.vmem [shape: f32[2,32,32], index: 5, kind: input, shape index: {}]
  %s6 = inlined_call_operand.vmem [shape: f32[2,32,64], index: 6, kind: input, shape index: {}]
  %s7 = inlined_call_operand.vmem [shape: f32[2,64,32], index: 7, kind: input, shape index: {}]
  %s8 = inlined_call_operand.vmem [shape: f32[32,128], index: 8, kind: input, shape index: {}]
  %s9 = inlined_call_operand.vmem [shape: f32[23,128], index: 9, kind: input, shape index: {}]
  %s10 = inlined_call_operand.vmem [shape: f32[16,128], index: 10, kind: output, shape index: {}]
  %s11 = sld [smem:[#allocation0]]
  $region50: #{teacher_model_forward.1} parent=0
    _
  %s13 = ssub.s32 1, %s11
  %s14 = scalar_select 0, %s13, %s11
  // Predicated region
  $region2: #{teacher_model_forward.1} parent=0 // pred_check
    _
  $region3: #{teacher_model_forward.1} parent=0 // pred_check_branch
    %16 = sbr.rel (0) target = $region5
  $region4: #{teacher_model_forward.1} parent=0 // pred_region
    _
  $region5: #{teacher_model_forward.1} parent=0 // pred_fallthru
    _
  // Predicated region
  $region6: #{teacher_model_forward.1} parent=0 // pred_check
    _
  $region7: #{teacher_model_forward.1} parent=0 // pred_check_branch
    %18 = sbr.rel (0) target = $region9
  $region8: #{teacher_model_forward.1} parent=0 // pred_region
    _
  $region9: #{teacher_model_forward.1} parent=0 // pred_fallthru
    _
  // Predicated region
  $region10: #{teacher_model_forward.1} parent=0 // pred_check
    _
  $region11: #{teacher_model_forward.1} parent=0 // pred_check_branch
    %20 = sbr.rel (0) target = $region13
  $region12: #{teacher_model_forward.1} parent=0 // pred_region
    _
  $region13: #{teacher_model_forward.1} parent=0 // pred_fallthru
    _
  // Predicated region
  $region14: #{teacher_model_forward.1} parent=0 // pred_check
    _
  $region15: #{teacher_model_forward.1} parent=0 // pred_check_branch
    %22 = sbr.rel (0) target = $region17
  $region16: #{teacher_model_forward.1} parent=0 // pred_region
    _
  $region17: #{teacher_model_forward.1} parent=0 // pred_fallthru
    _
  // Predicated region
  $region18: #{teacher_model_forward.1} parent=0 // pred_check
    _
  $region19: #{teacher_model_forward.1} parent=0 // pred_check_branch
    %24 = sbr.rel (0) target = $region21
  $region20: #{teacher_model_forward.1} parent=0 // pred_region
    _
  $region21: #{teacher_model_forward.1} parent=0 // pred_fallthru
    _
  // Predicated region
  $region22: #{teacher_model_forward.1} parent=0 // pred_check
    _
  $region23: #{teacher_model_forward.1} parent=0 // pred_check_branch
    %26 = sbr.rel (0) target = $region25
  $region24: #{teacher_model_forward.1} parent=0 // pred_region
    _
  $region25: #{teacher_model_forward.1} parent=0 // pred_fallthru
    _
  // Predicated region
  $region26: #{teacher_model_forward.1} parent=0 // pred_check
    _
  $region27: #{teacher_model_forward.1} parent=0 // pred_check_branch
    %28 = sbr.rel (0) target = $region29
  $region28: #{teacher_model_forward.1} parent=0 // pred_region
    _
  $region29: #{teacher_model_forward.1} parent=0 // pred_fallthru
    _
  // Predicated region
  $region30: #{teacher_model_forward.1} parent=0 // pred_check
    _
  $region31: #{teacher_model_forward.1} parent=0 // pred_check_branch
    %30 = sbr.rel (0) target = $region33
  $region32: #{teacher_model_forward.1} parent=0 // pred_region
    _
  $region33: #{teacher_model_forward.1} parent=0 // pred_fallthru
    _
  // Predicated region
  $region34: #{teacher_model_forward.1} parent=0 // pred_check
    _
  $region35: #{teacher_model_forward.1} parent=0 // pred_check_branch
    %32 = sbr.rel (0) target = $region37
  $region36: #{teacher_model_forward.1} parent=0 // pred_region
    _
  $region37: #{teacher_model_forward.1} parent=0 // pred_fallthru
    _
  // Predicated region
  $region38: #{teacher_model_forward.1} parent=0 // pred_check
    _
  $region39: #{teacher_model_forward.1} parent=0 // pred_check_branch
    %34 = sbr.rel (0) target = $region41
  $region40: #{teacher_model_forward.1} parent=0 // pred_region
    _
  $region41: #{teacher_model_forward.1} parent=0 // pred_fallthru
    _
  %v35 = vld [vmem:[%s0] sm:$0xff]
  %v36 = vld [vmem:[%s0 + $0x8] sm:$0xff]
  %v37 = vld [vmem:[%s9] sm:$0x1]
  %v38 = vld [vmem:[%s9 + $0x1] sm:$0x1]
  %vm39 = vcmask 261120
  %v40 = vsel %vm39, %v35, 0.0
  %41 = vadd.xlane.f32.xlu0 %v40
  %v42 = vpop.xlane.xlu0 %41
  %v43 = vsel %vm39, %v36, 0.0
  %44 = vadd.xlane.f32.xlu0 %v43
  %v45 = vpop.xlane.xlu0 %44
  %v46 = vrcp.pop 32.0
  %v47 = vmul.f32 32.0, %v46
  %v48 = vsub.f32 1.0, %v47
  %v49 = vmul.f32 %v46, %v48
  %v50 = vadd.f32 %v46, %v49
  %vm51 = vweird.f32 %v46
  %v52 = vsel %vm51, %v46, %v50
  %v53 = vmul.f32 %v42, %v52
  %v54 = vmul.f32 %v45, %v52
  %v55 = vsub.f32 %v35, %v53
  %v56 = vsub.f32 %v36, %v54
  %v57 = vmul.f32 %v55, %v55
  %v58 = vmul.f32 %v56, %v56
  %v59 = vsel %vm39, %v57, 0.0
  %60 = vadd.xlane.f32.xlu0 %v59
  %v61 = vpop.xlane.xlu0 %60
  %v62 = vsel %vm39, %v58, 0.0
  %63 = vadd.xlane.f32.xlu0 %v62
  %v64 = vpop.xlane.xlu0 %63
  %v65 = vmul.f32 %v61, %v52
  %v66 = vmul.f32 %v64, %v52
  %v67 = vadd.f32 %v65, 1e-12
  %v68 = vadd.f32 %v66, 1e-12
  %v69 = vrsqrt.pop %v67
  %v70 = vmul.f32 %v69, %v67
  %v71 = vmul.f32 %v70, %v69
  %v72 = vmul.f32 0.5, %v71
  %v73 = vsub.f32 1.5, %v72
  %v74 = vmul.f32 %v69, %v73
  %vm75 = vweird.f32 %v67
  %vm76 = vweird.f32 %v69
  %vm77 = vmor %vm75, %vm76
  %v78 = vsel %vm77, %v69, %v74
  %v79 = vrsqrt.pop %v68
  %v80 = vmul.f32 %v79, %v68
  %v81 = vmul.f32 %v80, %v79
  %v82 = vmul.f32 0.5, %v81
  %v83 = vsub.f32 1.5, %v82
  %v84 = vmul.f32 %v79, %v83
  %vm85 = vweird.f32 %v68
  %vm86 = vweird.f32 %v79
  %vm87 = vmor %vm85, %vm86
  %v88 = vsel %vm87, %v79, %v84
  %v89 = vmul.f32 %v55, %v78
  %v90 = vmul.f32 %v56, %v88
  %v91 = vperm.slane %v37, 0
  %v92 = vmul.f32 %v89, %v91
  %v93 = vmul.f32 %v90, %v91
  %v94 = vperm.slane %v38, 0
  %v95 = vadd.f32 %v92, %v94
  %v96 = vadd.f32 %v93, %v94
  %97 = vst.msk [vmem:[#allocation2] sm:$0xff] %vm39, %v95
  %98 = vst.msk [vmem:[#allocation2 + $0x8] sm:$0xff] %vm39, %v96
  %v99 = vld [vmem:[#allocation2] sm:$0xff]
  %v100 = vld [vmem:[#allocation2 + $0x8] sm:$0xff]
  %v101 = vld [vmem:[%s2] sm:$0xff]
  %v102 = vld [vmem:[%s2 + $0x8] sm:$0xff]
  %v103 = vld [vmem:[%s2 + $0x10] sm:$0xff]
  %v104 = vld [vmem:[%s2 + $0x18] sm:$0xff]
  %v105 = vld [vmem:[%s3] sm:$0xff]
  %v106 = vld [vmem:[%s3 + $0x8] sm:$0xff]
  %v107 = vld [vmem:[%s3 + $0x10] sm:$0xff]
  %v108 = vld [vmem:[%s3 + $0x18] sm:$0xff]
  %v109 = vld [vmem:[%s4] sm:$0xff]
  %v110 = vld [vmem:[%s4 + $0x8] sm:$0xff]
  %v111 = vld [vmem:[%s4 + $0x10] sm:$0xff]
  %v112 = vld [vmem:[%s4 + $0x18] sm:$0xff]
  %v113 = vld [vmem:[%s5] sm:$0xff]
  %v114 = vld [vmem:[%s5 + $0x8] sm:$0xff]
  %v115 = vld [vmem:[%s5 + $0x10] sm:$0xff]
  %v116 = vld [vmem:[%s5 + $0x18] sm:$0xff]
  %v117 = vld [vmem:[%s9 + $0x3] sm:$0x1]
  %v118 = vperm.slane %v117, 0
  %v120 = vsel %vm39, %v99, 0
  %v123 = vsel %vm39, %v100, 0
  %125 = vmatpush.msra.mxu0 0.0
  %126 = vmatpush.msra.mxu0 0.0
  %127 = vmatpush.msra.mxu0 0.0
  %128 = vmatpush.msra.mxu0 0.0
  %129 = vmatpush.msra.mxu0 0.0
  %130 = vmatpush.msra.mxu0 0.0
  %131 = vmatpush.msra.mxu0 0.0
  %132 = vmatpush.msra.mxu0 0.0
  %133 = vmatpush.msra.mxu0 0.0
  %134 = vmatpush.msra.mxu0 0.0
  %135 = vmatpush.msra.mxu0 0.0
  %136 = vmatpush.msra.mxu0 0.0
  %137 = vmatpush.msra.mxu0 %v104
  %138 = vmatpush.msra.mxu0 %v103
  %139 = vmatpush.msra.mxu0 %v102
  %140 = vmatpush.msra.mxu0 %v101
  %141 = vmatmul.f32.gmra.mxu0 %v120
  %v142 = vpop.f32.mrf.mxu0
  %v143 = vadd.f32 %v118, %v142
  %144 = vmatmul.f32.gmra.mxu0 %v123
  %v145 = vpop.f32.mrf.mxu0
  %v146 = vadd.f32 %v118, %v145
  %147 = vdwg.mxu0
  %v148 = vmul.f32 %v143, 0.25
  %v149 = vmul.f32 %v146, 0.25
  %v150 = vld [vmem:[%s9 + $0x4] sm:$0x1]
  %v151 = vperm.slane %v150, 0
  %152 = vmatpush.msra.mxu0 0.0
  %153 = vmatpush.msra.mxu0 0.0
  %154 = vmatpush.msra.mxu0 0.0
  %155 = vmatpush.msra.mxu0 0.0
  %156 = vmatpush.msra.mxu0 0.0
  %157 = vmatpush.msra.mxu0 0.0
  %158 = vmatpush.msra.mxu0 0.0
  %159 = vmatpush.msra.mxu0 0.0
  %160 = vmatpush.msra.mxu0 0.0
  %161 = vmatpush.msra.mxu0 0.0
  %162 = vmatpush.msra.mxu0 0.0
  %163 = vmatpush.msra.mxu0 0.0
  %164 = vmatpush.msra.mxu0 %v108
  %165 = vmatpush.msra.mxu0 %v107
  %166 = vmatpush.msra.mxu0 %v106
  %167 = vmatpush.msra.mxu0 %v105
  %168 = vmatmul.f32.gmra.mxu0 %v120
  %v169 = vpop.f32.mrf.mxu0
  %v170 = vadd.f32 %v151, %v169
  %171 = vmatmul.f32.gmra.mxu0 %v123
  %v172 = vpop.f32.mrf.mxu0
  %v173 = vadd.f32 %v151, %v172
  %174 = vdwg.mxu0
  %v175 = vld [vmem:[%s9 + $0x5] sm:$0x1]
  %v176 = vperm.slane %v175, 0
  %177 = vmatpush.msra.mxu0 0.0
  %178 = vmatpush.msra.mxu0 0.0
  %179 = vmatpush.msra.mxu0 0.0
  %180 = vmatpush.msra.mxu0 0.0
  %181 = vmatpush.msra.mxu0 0.0
  %182 = vmatpush.msra.mxu0 0.0
  %183 = vmatpush.msra.mxu0 0.0
  %184 = vmatpush.msra.mxu0 0.0
  %185 = vmatpush.msra.mxu0 0.0
  %186 = vmatpush.msra.mxu0 0.0
  %187 = vmatpush.msra.mxu0 0.0
  %188 = vmatpush.msra.mxu0 0.0
  %189 = vmatpush.msra.mxu0 %v112
  %190 = vmatpush.msra.mxu0 %v111
  %191 = vmatpush.msra.mxu0 %v110
  %192 = vmatpush.msra.mxu0 %v109
  %193 = vmatmul.f32.gmra.mxu0 %v120
  %v194 = vpop.f32.mrf.mxu0
  %v195 = vadd.f32 %v176, %v194
  %196 = vmatmul.f32.gmra.mxu0 %v123
  %v197 = vpop.f32.mrf.mxu0
  %v198 = vadd.f32 %v176, %v197
  %199 = vdwg.mxu0
  %v200 = vld [vmem:[%s1] sm:$0x1]
  %v201 = vperm.slane %v200, 0
  %vm202 = vcmask 130048
  %v204 = vsel %vm202, %v148, 0
  %v207 = vsel %vm202, %v170, 0
  %209 = vmatpush.xpose.msra.mxu0 0.0
  %210 = vmatpush.xpose.msra.mxu0 0.0
  %211 = vmatpush.xpose.msra.mxu0 0.0
  %212 = vmatpush.xpose.msra.mxu0 0.0
  %213 = vmatpush.xpose.msra.mxu0 0.0
  %214 = vmatpush.xpose.msra.mxu0 0.0
  %215 = vmatpush.xpose.msra.mxu0 0.0
  %216 = vmatpush.xpose.msra.mxu0 0.0
  %217 = vmatpush.xpose.msra.mxu0 0.0
  %218 = vmatpush.xpose.msra.mxu0 0.0
  %219 = vmatpush.xpose.msra.mxu0 0.0
  %220 = vmatpush.xpose.msra.mxu0 0.0
  %221 = vmatpush.xpose.msra.mxu0 0.0
  %222 = vmatpush.xpose.msra.mxu0 0.0
  %223 = vmatpush.xpose.msra.mxu0 0.0
  %224 = vmatpush.xpose.msra.mxu0 %v207
  %225 = vmatmul.f32.gmra.mxu0 %v204
  %v226 = vpop.f32.mrf.mxu0
  %v227 = vadd.f32 %v201, %v226
  %228 = vdwg.mxu0
  %vm229 = vcmask 64512
  %v230 = vsel %vm229, %v227, -inf
  %231 = vmax.xlane.f32.xlu0 %v230
  %v232 = vpop.xlane.xlu0 %231
  %v233 = vsub.f32 %v227, %v232
  %v234 = vmul.f32 %v233, 1.442695
  %v235 = vpow.pop %v234
  %v236 = vsel %vm229, %v235, 0.0
  %237 = vadd.xlane.f32.xlu0 %v236
  %v238 = vpop.xlane.xlu0 %237
  %v239 = vrcp.pop %v238
  %v240 = vmul.f32 %v238, %v239
  %v241 = vsub.f32 1.0, %v240
  %v242 = vmul.f32 %v239, %v241
  %v243 = vadd.f32 %v239, %v242
  %vm244 = vweird.f32 %v238
  %vm245 = vweird.f32 %v239
  %vm246 = vmor %vm244, %vm245
  %v247 = vsel %vm246, %v239, %v243
  %v248 = vand.u32 2147483647, %v238
  %vm249 = vcmp.eq.f32.partialorder %v248, 8.507059e+37
  %v250 = vand.u32 %v238, 2147483648
  %v251 = vor.u32 1.1754944e-38, %v250
  %v252 = vsel %vm249, %v251, %v247
  %v253 = vmul.f32 %v235, %v252
  %v255 = vsel %vm229, %v253, 0
  %257 = vmatpush.msra.mxu0 0.0
  %258 = vmatpush.msra.mxu0 0.0
  %259 = vmatpush.msra.mxu0 0.0
  %260 = vmatpush.msra.mxu0 0.0
  %261 = vmatpush.msra.mxu0 0.0
  %262 = vmatpush.msra.mxu0 0.0
  %263 = vmatpush.msra.mxu0 0.0
  %264 = vmatpush.msra.mxu0 0.0
  %265 = vmatpush.msra.mxu0 0.0
  %266 = vmatpush.msra.mxu0 0.0
  %267 = vmatpush.msra.mxu0 0.0
  %268 = vmatpush.msra.mxu0 0.0
  %269 = vmatpush.msra.mxu0 0.0
  %270 = vmatpush.msra.mxu0 0.0
  %271 = vmatpush.msra.mxu0 0.0
  %272 = vmatpush.msra.mxu0 %v195
  %273 = vmatmul.f32.gmra.mxu0 %v255
  %v274 = vpop.f32.mrf.mxu0
  %v275 = vadd.f32 0.0, %v274
  %276 = vdwg.mxu0
  %277 = vrot.lane.b32.xlu0 %v148, 112
  %v278 = vpop.permute.xlu0 %277
  %279 = vrot.lane.b32.xlu0 %v170, 112
  %v280 = vpop.permute.xlu0 %279
  %v281 = vsel %vm202, %v278, 0
  %v283 = vsel %vm202, %v280, 0
  %285 = vmatpush.xpose.msra.mxu0 0.0
  %286 = vmatpush.xpose.msra.mxu0 0.0
  %287 = vmatpush.xpose.msra.mxu0 0.0
  %288 = vmatpush.xpose.msra.mxu0 0.0
  %289 = vmatpush.xpose.msra.mxu0 0.0
  %290 = vmatpush.xpose.msra.mxu0 0.0
  %291 = vmatpush.xpose.msra.mxu0 0.0
  %292 = vmatpush.xpose.msra.mxu0 0.0
  %293 = vmatpush.xpose.msra.mxu0 0.0
  %294 = vmatpush.xpose.msra.mxu0 0.0
  %295 = vmatpush.xpose.msra.mxu0 0.0
  %296 = vmatpush.xpose.msra.mxu0 0.0
  %297 = vmatpush.xpose.msra.mxu0 0.0
  %298 = vmatpush.xpose.msra.mxu0 0.0
  %299 = vmatpush.xpose.msra.mxu0 0.0
  %300 = vmatpush.xpose.msra.mxu0 %v283
  %301 = vmatmul.f32.gmra.mxu0 %v281
  %v302 = vpop.f32.mrf.mxu0
  %v303 = vadd.f32 %v201, %v302
  %304 = vdwg.mxu0
  %v305 = vsel %vm229, %v303, -inf
  %306 = vmax.xlane.f32.xlu0 %v305
  %v307 = vpop.xlane.xlu0 %306
  %v308 = vsub.f32 %v303, %v307
  %v309 = vmul.f32 %v308, 1.442695
  %v310 = vpow.pop %v309
  %v311 = vsel %vm229, %v310, 0.0
  %312 = vadd.xlane.f32.xlu0 %v311
  %v313 = vpop.xlane.xlu0 %312
  %v314 = vrcp.pop %v313
  %v315 = vmul.f32 %v313, %v314
  %v316 = vsub.f32 1.0, %v315
  %v317 = vmul.f32 %v314, %v316
  %v318 = vadd.f32 %v314, %v317
  %vm319 = vweird.f32 %v313
  %vm320 = vweird.f32 %v314
  %vm321 = vmor %vm319, %vm320
  %v322 = vsel %vm321, %v314, %v318
  %v323 = vand.u32 2147483647, %v313
  %vm324 = vcmp.eq.f32.partialorder %v323, 8.507059e+37
  %v325 = vand.u32 %v313, 2147483648
  %v326 = vor.u32 1.1754944e-38, %v325
  %v327 = vsel %vm324, %v326, %v322
  %v328 = vmul.f32 %v310, %v327
  %330 = vrot.lane.b32.xlu0 %v195, 112
  %v331 = vpop.permute.xlu0 %330
  %v334 = vsel %vm229, %v328, 0
  %336 = vmatpush.msra.mxu0 0.0
  %337 = vmatpush.msra.mxu0 0.0
  %338 = vmatpush.msra.mxu0 0.0
  %339 = vmatpush.msra.mxu0 0.0
  %340 = vmatpush.msra.mxu0 0.0
  %341 = vmatpush.msra.mxu0 0.0
  %342 = vmatpush.msra.mxu0 0.0
  %343 = vmatpush.msra.mxu0 0.0
  %344 = vmatpush.msra.mxu0 0.0
  %345 = vmatpush.msra.mxu0 0.0
  %346 = vmatpush.msra.mxu0 0.0
  %347 = vmatpush.msra.mxu0 0.0
  %348 = vmatpush.msra.mxu0 0.0
  %349 = vmatpush.msra.mxu0 0.0
  %350 = vmatpush.msra.mxu0 0.0
  %351 = vmatpush.msra.mxu0 %v331
  %352 = vmatmul.f32.gmra.mxu0 %v334
  %v353 = vpop.f32.mrf.mxu0
  %v354 = vadd.f32 0.0, %v353
  %355 = vdwg.mxu0
  %v357 = vsel %vm202, %v354, 0
  %359 = vmatpush.msra.mxu0 0.0
  %360 = vmatpush.msra.mxu0 0.0
  %361 = vmatpush.msra.mxu0 0.0
  %362 = vmatpush.msra.mxu0 0.0
  %363 = vmatpush.msra.mxu0 0.0
  %364 = vmatpush.msra.mxu0 0.0
  %365 = vmatpush.msra.mxu0 0.0
  %366 = vmatpush.msra.mxu0 0.0
  %367 = vmatpush.msra.mxu0 0.0
  %368 = vmatpush.msra.mxu0 0.0
  %369 = vmatpush.msra.mxu0 0.0
  %370 = vmatpush.msra.mxu0 0.0
  %371 = vmatpush.msra.mxu0 0.0
  %372 = vmatpush.msra.mxu0 0.0
  %373 = vmatpush.msra.mxu0 %v116
  %374 = vmatpush.msra.mxu0 %v115
  %375 = vmatmul.f32.gmra.mxu0 %v357
  %v376 = vpop.f32.mrf.mxu0
  %v377 = vadd.f32 0.0, %v376
  %378 = vdwg.mxu0
  %v380 = vsel %vm202, %v275, 0
  %382 = vmatpush.msra.mxu0 0.0
  %383 = vmatpush.msra.mxu0 0.0
  %384 = vmatpush.msra.mxu0 0.0
  %385 = vmatpush.msra.mxu0 0.0
  %386 = vmatpush.msra.mxu0 0.0
  %387 = vmatpush.msra.mxu0 0.0
  %388 = vmatpush.msra.mxu0 0.0
  %389 = vmatpush.msra.mxu0 0.0
  %390 = vmatpush.msra.mxu0 0.0
  %391 = vmatpush.msra.mxu0 0.0
  %392 = vmatpush.msra.mxu0 0.0
  %393 = vmatpush.msra.mxu0 0.0
  %394 = vmatpush.msra.mxu0 0.0
  %395 = vmatpush.msra.mxu0 0.0
  %396 = vmatpush.msra.mxu0 %v114
  %397 = vmatpush.msra.mxu0 %v113
  %398 = vmatmul.f32.gmra.mxu0 %v380
  %v399 = vpop.f32.mrf.mxu0
  %v400 = vadd.f32 %v377, %v399
  %401 = vdwg.mxu0
  %v402 = vld [vmem:[%s1 + $0x1] sm:$0x1]
  %v403 = vperm.slane %v402, 0
  %v405 = vsel %vm202, %v149, 0
  %v408 = vsel %vm202, %v173, 0
  %410 = vmatpush.xpose.msra.mxu0 0.0
  %411 = vmatpush.xpose.msra.mxu0 0.0
  %412 = vmatpush.xpose.msra.mxu0 0.0
  %413 = vmatpush.xpose.msra.mxu0 0.0
  %414 = vmatpush.xpose.msra.mxu0 0.0
  %415 = vmatpush.xpose.msra.mxu0 0.0
  %416 = vmatpush.xpose.msra.mxu0 0.0
  %417 = vmatpush.xpose.msra.mxu0 0.0
  %418 = vmatpush.xpose.msra.mxu0 0.0
  %419 = vmatpush.xpose.msra.mxu0 0.0
  %420 = vmatpush.xpose.msra.mxu0 0.0
  %421 = vmatpush.xpose.msra.mxu0 0.0
  %422 = vmatpush.xpose.msra.mxu0 0.0
  %423 = vmatpush.xpose.msra.mxu0 0.0
  %424 = vmatpush.xpose.msra.mxu0 0.0
  %425 = vmatpush.xpose.msra.mxu0 %v408
  %426 = vmatmul.f32.gmra.mxu0 %v405
  %v427 = vpop.f32.mrf.mxu0
  %v428 = vadd.f32 %v403, %v427
  %429 = vdwg.mxu0
  %v430 = vsel %vm229, %v428, -inf
  %431 = vmax.xlane.f32.xlu0 %v430
  %v432 = vpop.xlane.xlu0 %431
  %v433 = vsub.f32 %v428, %v432
  %v434 = vmul.f32 %v433, 1.442695
  %v435 = vpow.pop %v434
  %v436 = vsel %vm229, %v435, 0.0
  %437 = vadd.xlane.f32.xlu0 %v436
  %v438 = vpop.xlane.xlu0 %437
  %v439 = vrcp.pop %v438
  %v440 = vmul.f32 %v438, %v439
  %v441 = vsub.f32 1.0, %v440
  %v442 = vmul.f32 %v439, %v441
  %v443 = vadd.f32 %v439, %v442
  %vm444 = vweird.f32 %v438
  %vm445 = vweird.f32 %v439
  %vm446 = vmor %vm444, %vm445
  %v447 = vsel %vm446, %v439, %v443
  %v448 = vand.u32 2147483647, %v438
  %vm449 = vcmp.eq.f32.partialorder %v448, 8.507059e+37
  %v450 = vand.u32 %v438, 2147483648
  %v451 = vor.u32 1.1754944e-38, %v450
  %v452 = vsel %vm449, %v451, %v447
  %v453 = vmul.f32 %v435, %v452
  %v455 = vsel %vm229, %v453, 0
  %457 = vmatpush.msra.mxu0 0.0
  %458 = vmatpush.msra.mxu0 0.0
  %459 = vmatpush.msra.mxu0 0.0
  %460 = vmatpush.msra.mxu0 0.0
  %461 = vmatpush.msra.mxu0 0.0
  %462 = vmatpush.msra.mxu0 0.0
  %463 = vmatpush.msra.mxu0 0.0
  %464 = vmatpush.msra.mxu0 0.0
  %465 = vmatpush.msra.mxu0 0.0
  %466 = vmatpush.msra.mxu0 0.0
  %467 = vmatpush.msra.mxu0 0.0
  %468 = vmatpush.msra.mxu0 0.0
  %469 = vmatpush.msra.mxu0 0.0
  %470 = vmatpush.msra.mxu0 0.0
  %471 = vmatpush.msra.mxu0 0.0
  %472 = vmatpush.msra.mxu0 %v198
  %473 = vmatmul.f32.gmra.mxu0 %v455
  %v474 = vpop.f32.mrf.mxu0
  %v475 = vadd.f32 0.0, %v474
  %476 = vdwg.mxu0
  %477 = vrot.lane.b32.xlu0 %v149, 112
  %v478 = vpop.permute.xlu0 %477
  %479 = vrot.lane.b32.xlu0 %v173, 112
  %v480 = vpop.permute.xlu0 %479
  %v481 = vsel %vm202, %v478, 0
  %v483 = vsel %vm202, %v480, 0
  %485 = vmatpush.xpose.msra.mxu0 0.0
  %486 = vmatpush.xpose.msra.mxu0 0.0
  %487 = vmatpush.xpose.msra.mxu0 0.0
  %488 = vmatpush.xpose.msra.mxu0 0.0
  %489 = vmatpush.xpose.msra.mxu0 0.0
  %490 = vmatpush.xpose.msra.mxu0 0.0
  %491 = vmatpush.xpose.msra.mxu0 0.0
  %492 = vmatpush.xpose.msra.mxu0 0.0
  %493 = vmatpush.xpose.msra.mxu0 0.0
  %494 = vmatpush.xpose.msra.mxu0 0.0
  %495 = vmatpush.xpose.msra.mxu0 0.0
  %496 = vmatpush.xpose.msra.mxu0 0.0
  %497 = vmatpush.xpose.msra.mxu0 0.0
  %498 = vmatpush.xpose.msra.mxu0 0.0
  %499 = vmatpush.xpose.msra.mxu0 0.0
  %500 = vmatpush.xpose.msra.mxu0 %v483
  %501 = vmatmul.f32.gmra.mxu0 %v481
  %v502 = vpop.f32.mrf.mxu0
  %v503 = vadd.f32 %v403, %v502
  %504 = vdwg.mxu0
  %v505 = vsel %vm229, %v503, -inf
  %506 = vmax.xlane.f32.xlu0 %v505
  %v507 = vpop.xlane.xlu0 %506
  %v508 = vsub.f32 %v503, %v507
  %v509 = vmul.f32 %v508, 1.442695
  %v510 = vpow.pop %v509
  %v511 = vsel %vm229, %v510, 0.0
  %512 = vadd.xlane.f32.xlu0 %v511
  %v513 = vpop.xlane.xlu0 %512
  %v514 = vrcp.pop %v513
  %v515 = vmul.f32 %v513, %v514
  %v516 = vsub.f32 1.0, %v515
  %v517 = vmul.f32 %v514, %v516
  %v518 = vadd.f32 %v514, %v517
  %vm519 = vweird.f32 %v513
  %vm520 = vweird.f32 %v514
  %vm521 = vmor %vm519, %vm520
  %v522 = vsel %vm521, %v514, %v518
  %v523 = vand.u32 2147483647, %v513
  %vm524 = vcmp.eq.f32.partialorder %v523, 8.507059e+37
  %v525 = vand.u32 %v513, 2147483648
  %v526 = vor.u32 1.1754944e-38, %v525
  %v527 = vsel %vm524, %v526, %v522
  %v528 = vmul.f32 %v510, %v527
  %530 = vrot.lane.b32.xlu0 %v198, 112
  %v531 = vpop.permute.xlu0 %530
  %v534 = vsel %vm229, %v528, 0
  %536 = vmatpush.msra.mxu0 0.0
  %537 = vmatpush.msra.mxu0 0.0
  %538 = vmatpush.msra.mxu0 0.0
  %539 = vmatpush.msra.mxu0 0.0
  %540 = vmatpush.msra.mxu0 0.0
  %541 = vmatpush.msra.mxu0 0.0
  %542 = vmatpush.msra.mxu0 0.0
  %543 = vmatpush.msra.mxu0 0.0
  %544 = vmatpush.msra.mxu0 0.0
  %545 = vmatpush.msra.mxu0 0.0
  %546 = vmatpush.msra.mxu0 0.0
  %547 = vmatpush.msra.mxu0 0.0
  %548 = vmatpush.msra.mxu0 0.0
  %549 = vmatpush.msra.mxu0 0.0
  %550 = vmatpush.msra.mxu0 0.0
  %551 = vmatpush.msra.mxu0 %v531
  %552 = vmatmul.f32.gmra.mxu0 %v534
  %v553 = vpop.f32.mrf.mxu0
  %v554 = vadd.f32 0.0, %v553
  %555 = vdwg.mxu0
  %v557 = vsel %vm202, %v554, 0
  %559 = vmatpush.msra.mxu0 0.0
  %560 = vmatpush.msra.mxu0 0.0
  %561 = vmatpush.msra.mxu0 0.0
  %562 = vmatpush.msra.mxu0 0.0
  %563 = vmatpush.msra.mxu0 0.0
  %564 = vmatpush.msra.mxu0 0.0
  %565 = vmatpush.msra.mxu0 0.0
  %566 = vmatpush.msra.mxu0 0.0
  %567 = vmatpush.msra.mxu0 0.0
  %568 = vmatpush.msra.mxu0 0.0
  %569 = vmatpush.msra.mxu0 0.0
  %570 = vmatpush.msra.mxu0 0.0
  %571 = vmatpush.msra.mxu0 0.0
  %572 = vmatpush.msra.mxu0 0.0
  %573 = vmatpush.msra.mxu0 %v116
  %574 = vmatpush.msra.mxu0 %v115
  %575 = vmatmul.f32.gmra.mxu0 %v557
  %v576 = vpop.f32.mrf.mxu0
  %v577 = vadd.f32 0.0, %v576
  %578 = vdwg.mxu0
  %v580 = vsel %vm202, %v475, 0
  %582 = vmatpush.msra.mxu0 0.0
  %583 = vmatpush.msra.mxu0 0.0
  %584 = vmatpush.msra.mxu0 0.0
  %585 = vmatpush.msra.mxu0 0.0
  %586 = vmatpush.msra.mxu0 0.0
  %587 = vmatpush.msra.mxu0 0.0
  %588 = vmatpush.msra.mxu0 0.0
  %589 = vmatpush.msra.mxu0 0.0
  %590 = vmatpush.msra.mxu0 0.0
  %591 = vmatpush.msra.mxu0 0.0
  %592 = vmatpush.msra.mxu0 0.0
  %593 = vmatpush.msra.mxu0 0.0
  %594 = vmatpush.msra.mxu0 0.0
  %595 = vmatpush.msra.mxu0 0.0
  %596 = vmatpush.msra.mxu0 %v114
  %597 = vmatpush.msra.mxu0 %v113
  %598 = vmatmul.f32.gmra.mxu0 %v580
  %v599 = vpop.f32.mrf.mxu0
  %v600 = vadd.f32 %v577, %v599
  %601 = vdwg.mxu0
  %v602 = vld [vmem:[%s9 + $0x6] sm:$0x1]
  %v603 = vperm.slane %v602, 0
  %v604 = vadd.f32 %v400, %v603
  %v605 = vadd.f32 %v600, %v603
  %v606 = vadd.f32 %v604, %v99
  %v607 = vadd.f32 %v605, %v100
  %v608 = vld [vmem:[%s9 + $0x7] sm:$0x1]
  %v609 = vld [vmem:[%s9 + $0x8] sm:$0x1]
  %v610 = vsel %vm39, %v606, 0.0
  %611 = vadd.xlane.f32.xlu0 %v610
  %v612 = vpop.xlane.xlu0 %611
  %v613 = vsel %vm39, %v607, 0.0
  %614 = vadd.xlane.f32.xlu0 %v613
  %v615 = vpop.xlane.xlu0 %614
  %v616 = vmul.f32 %v612, %v52
  %v617 = vmul.f32 %v615, %v52
  %v618 = vsub.f32 %v606, %v616
  %v619 = vsub.f32 %v607, %v617
  %v620 = vmul.f32 %v618, %v618
  %v621 = vmul.f32 %v619, %v619
  %v622 = vsel %vm39, %v620, 0.0
  %623 = vadd.xlane.f32.xlu0 %v622
  %v624 = vpop.xlane.xlu0 %623
  %v625 = vsel %vm39, %v621, 0.0
  %626 = vadd.xlane.f32.xlu0 %v625
  %v627 = vpop.xlane.xlu0 %626
  %v628 = vmul.f32 %v624, %v52
  %v629 = vmul.f32 %v627, %v52
  %v630 = vadd.f32 %v628, 1e-12
  %v631 = vadd.f32 %v629, 1e-12
  %v632 = vrsqrt.pop %v630
  %v633 = vmul.f32 %v632, %v630
  %v634 = vmul.f32 %v633, %v632
  %v635 = vmul.f32 0.5, %v634
  %v636 = vsub.f32 1.5, %v635
  %v637 = vmul.f32 %v632, %v636
  %vm638 = vweird.f32 %v630
  %vm639 = vweird.f32 %v632
  %vm640 = vmor %vm638, %vm639
  %v641 = vsel %vm640, %v632, %v637
  %v642 = vrsqrt.pop %v631
  %v643 = vmul.f32 %v642, %v631
  %v644 = vmul.f32 %v643, %v642
  %v645 = vmul.f32 0.5, %v644
  %v646 = vsub.f32 1.5, %v645
  %v647 = vmul.f32 %v642, %v646
  %vm648 = vweird.f32 %v631
  %vm649 = vweird.f32 %v642
  %vm650 = vmor %vm648, %vm649
  %v651 = vsel %vm650, %v642, %v647
  %v652 = vmul.f32 %v618, %v641
  %v653 = vmul.f32 %v619, %v651
  %v654 = vperm.slane %v608, 0
  %v655 = vmul.f32 %v652, %v654
  %v656 = vmul.f32 %v653, %v654
  %v657 = vperm.slane %v609, 0
  %v658 = vadd.f32 %v655, %v657
  %v659 = vadd.f32 %v656, %v657
  %v660 = vld [vmem:[%s6] sm:$0xff]
  %v661 = vld [vmem:[%s6 + $0x8] sm:$0xff]
  %v662 = vld [vmem:[%s6 + $0x10] sm:$0xff]
  %v663 = vld [vmem:[%s6 + $0x18] sm:$0xff]
  %v664 = vld [vmem:[%s9 + $0x9] sm:$0x1]
  %v665 = vperm.slane %v664, 0
  %v667 = vsel %vm39, %v658, 0
  %v670 = vsel %vm39, %v659, 0
  %672 = vmatpush.msra.mxu0 0.0
  %673 = vmatpush.msra.mxu0 0.0
  %674 = vmatpush.msra.mxu0 0.0
  %675 = vmatpush.msra.mxu0 0.0
  %676 = vmatpush.msra.mxu0 0.0
  %677 = vmatpush.msra.mxu0 0.0
  %678 = vmatpush.msra.mxu0 0.0
  %679 = vmatpush.msra.mxu0 0.0
  %680 = vmatpush.msra.mxu0 0.0
  %681 = vmatpush.msra.mxu0 0.0
  %682 = vmatpush.msra.mxu0 0.0
  %683 = vmatpush.msra.mxu0 0.0
  %684 = vmatpush.msra.mxu0 %v663
  %685 = vmatpush.msra.mxu0 %v662
  %686 = vmatpush.msra.mxu0 %v661
  %687 = vmatpush.msra.mxu0 %v660
  %688 = vmatmul.f32.gmra.mxu0 %v667
  %v689 = vpop.f32.mrf.mxu0
  %v690 = vadd.f32 %v665, %v689
  %691 = vmatmul.f32.gmra.mxu0 %v670
  %v692 = vpop.f32.mrf.mxu0
  %v693 = vadd.f32 %v665, %v692
  %694 = vdwg.mxu0
  %v695 = vmul.f32 %v690, 0.5
  %v696 = vmul.f32 %v693, 0.5
  %v697 = vmul.f32 %v690, 0.044715
  %v698 = vmul.f32 %v693, 0.044715
  %v699 = vmul.f32 %v697, %v690
  %v700 = vmul.f32 %v698, %v693
  %v701 = vmul.f32 %v699, %v690
  %v702 = vmul.f32 %v700, %v693
  %v703 = vadd.f32 %v690, %v701
  %v704 = vadd.f32 %v693, %v702
  %v705 = vmul.f32 %v703, 0.7978846
  %v706 = vmul.f32 %v704, 0.7978846
  %v707 = vtanh.pop %v705
  %v708 = vtanh.pop %v706
  %v709 = vadd.f32 %v707, 1.0
  %v710 = vadd.f32 %v708, 1.0
  %v711 = vmul.f32 %v695, %v709
  %v712 = vmul.f32 %v696, %v710
  %v713 = vld [vmem:[%s7] sm:$0xff]
  %v714 = vld [vmem:[%s7 + $0x8] sm:$0xff]
  %v715 = vld [vmem:[%s7 + $0x10] sm:$0xff]
  %v716 = vld [vmem:[%s7 + $0x18] sm:$0xff]
  %v717 = vld [vmem:[%s7 + $0x20] sm:$0xff]
  %v718 = vld [vmem:[%s7 + $0x28] sm:$0xff]
  %v719 = vld [vmem:[%s7 + $0x30] sm:$0xff]
  %v720 = vld [vmem:[%s7 + $0x38] sm:$0xff]
  %v721 = vld [vmem:[%s9 + $0xa] sm:$0x1]
  %v722 = vperm.slane %v721, 0
  %vm723 = vcmask 523264
  %v725 = vsel %vm723, %v711, 0
  %v728 = vsel %vm723, %v712, 0
  %730 = vmatpush.msra.mxu0 0.0
  %731 = vmatpush.msra.mxu0 0.0
  %732 = vmatpush.msra.mxu0 0.0
  %733 = vmatpush.msra.mxu0 0.0
  %734 = vmatpush.msra.mxu0 0.0
  %735 = vmatpush.msra.mxu0 0.0
  %736 = vmatpush.msra.mxu0 0.0
  %737 = vmatpush.msra.mxu0 0.0
  %738 = vmatpush.msra.mxu0 %v720
  %739 = vmatpush.msra.mxu0 %v719
  %740 = vmatpush.msra.mxu0 %v718
  %741 = vmatpush.msra.mxu0 %v717
  %742 = vmatpush.msra.mxu0 %v716
  %743 = vmatpush.msra.mxu0 %v715
  %744 = vmatpush.msra.mxu0 %v714
  %745 = vmatpush.msra.mxu0 %v713
  %746 = vmatmul.f32.gmra.mxu0 %v725
  %v747 = vpop.f32.mrf.mxu0
  %v748 = vadd.f32 %v722, %v747
  %749 = vmatmul.f32.gmra.mxu0 %v728
  %v750 = vpop.f32.mrf.mxu0
  %v751 = vadd.f32 %v722, %v750
  %752 = vdwg.mxu0
  %v753 = vadd.f32 %v748, %v658
  %v754 = vadd.f32 %v751, %v659
  %v755 = vld [vmem:[%s9 + $0xb] sm:$0x1]
  %v756 = vld [vmem:[%s9 + $0xc] sm:$0x1]
  %v757 = vsel %vm39, %v753, 0.0
  %758 = vadd.xlane.f32.xlu0 %v757
  %v759 = vpop.xlane.xlu0 %758
  %v760 = vsel %vm39, %v754, 0.0
  %761 = vadd.xlane.f32.xlu0 %v760
  %v762 = vpop.xlane.xlu0 %761
  %v763 = vmul.f32 %v759, %v52
  %v764 = vmul.f32 %v762, %v52
  %v765 = vsub.f32 %v753, %v763
  %v766 = vsub.f32 %v754, %v764
  %v767 = vmul.f32 %v765, %v765
  %v768 = vmul.f32 %v766, %v766
  %v769 = vsel %vm39, %v767, 0.0
  %770 = vadd.xlane.f32.xlu0 %v769
  %v771 = vpop.xlane.xlu0 %770
  %v772 = vsel %vm39, %v768, 0.0
  %773 = vadd.xlane.f32.xlu0 %v772
  %v774 = vpop.xlane.xlu0 %773
  %v775 = vmul.f32 %v771, %v52
  %v776 = vmul.f32 %v774, %v52
  %v777 = vadd.f32 %v775, 1e-12
  %v778 = vadd.f32 %v776, 1e-12
  %v779 = vrsqrt.pop %v777
  %v780 = vmul.f32 %v779, %v777
  %v781 = vmul.f32 %v780, %v779
  %v782 = vmul.f32 0.5, %v781
  %v783 = vsub.f32 1.5, %v782
  %v784 = vmul.f32 %v779, %v783
  %vm785 = vweird.f32 %v777
  %vm786 = vweird.f32 %v779
  %vm787 = vmor %vm785, %vm786
  %v788 = vsel %vm787, %v779, %v784
  %v789 = vrsqrt.pop %v778
  %v790 = vmul.f32 %v789, %v778
  %v791 = vmul.f32 %v790, %v789
  %v792 = vmul.f32 0.5, %v791
  %v793 = vsub.f32 1.5, %v792
  %v794 = vmul.f32 %v789, %v793
  %vm795 = vweird.f32 %v778
  %vm796 = vweird.f32 %v789
  %vm797 = vmor %vm795, %vm796
  %v798 = vsel %vm797, %v789, %v794
  %v799 = vmul.f32 %v765, %v788
  %v800 = vmul.f32 %v766, %v798
  %v801 = vperm.slane %v755, 0
  %v802 = vmul.f32 %v799, %v801
  %v803 = vmul.f32 %v800, %v801
  %v804 = vperm.slane %v756, 0
  %v805 = vadd.f32 %v802, %v804
  %v806 = vadd.f32 %v803, %v804
  %807 = vst.msk [vmem:[#allocation2] sm:$0xff] %vm39, %v805
  %808 = vst.msk [vmem:[#allocation2 + $0x8] sm:$0xff] %vm39, %v806
  %v809 = vld [vmem:[#allocation2] sm:$0xff]
  %v810 = vld [vmem:[#allocation2 + $0x8] sm:$0xff]
  %s811 = scalar_lea.vmem %s2, 32
  %v812 = vld [vmem:[%s811] sm:$0xff]
  %v813 = vld [vmem:[%s811 + $0x8] sm:$0xff]
  %v814 = vld [vmem:[%s811 + $0x10] sm:$0xff]
  %v815 = vld [vmem:[%s811 + $0x18] sm:$0xff]
  %s816 = scalar_lea.vmem %s3, 32
  %v817 = vld [vmem:[%s816] sm:$0xff]
  %v818 = vld [vmem:[%s816 + $0x8] sm:$0xff]
  %v819 = vld [vmem:[%s816 + $0x10] sm:$0xff]
  %v820 = vld [vmem:[%s816 + $0x18] sm:$0xff]
  %s821 = scalar_lea.vmem %s4, 32
  %v822 = vld [vmem:[%s821] sm:$0xff]
  %v823 = vld [vmem:[%s821 + $0x8] sm:$0xff]
  %v824 = vld [vmem:[%s821 + $0x10] sm:$0xff]
  %v825 = vld [vmem:[%s821 + $0x18] sm:$0xff]
  %s826 = scalar_lea.vmem %s5, 32
  %v827 = vld [vmem:[%s826] sm:$0xff]
  %v828 = vld [vmem:[%s826 + $0x8] sm:$0xff]
  %v829 = vld [vmem:[%s826 + $0x10] sm:$0xff]
  %v830 = vld [vmem:[%s826 + $0x18] sm:$0xff]
  %v831 = vld [vmem:[%s9 + $0xd] sm:$0x1]
  %v832 = vperm.slane %v831, 0
  %v834 = vsel %vm39, %v809, 0
  %v837 = vsel %vm39, %v810, 0
  %839 = vmatpush.msra.mxu0 0.0
  %840 = vmatpush.msra.mxu0 0.0
  %841 = vmatpush.msra.mxu0 0.0
  %842 = vmatpush.msra.mxu0 0.0
  %843 = vmatpush.msra.mxu0 0.0
  %844 = vmatpush.msra.mxu0 0.0
  %845 = vmatpush.msra.mxu0 0.0
  %846 = vmatpush.msra.mxu0 0.0
  %847 = vmatpush.msra.mxu0 0.0
  %848 = vmatpush.msra.mxu0 0.0
  %849 = vmatpush.msra.mxu0 0.0
  %850 = vmatpush.msra.mxu0 0.0
  %851 = vmatpush.msra.mxu0 %v815
  %852 = vmatpush.msra.mxu0 %v814
  %853 = vmatpush.msra.mxu0 %v813
  %854 = vmatpush.msra.mxu0 %v812
  %855 = vmatmul.f32.gmra.mxu0 %v834
  %v856 = vpop.f32.mrf.mxu0
  %v857 = vadd.f32 %v832, %v856
  %858 = vmatmul.f32.gmra.mxu0 %v837
  %v859 = vpop.f32.mrf.mxu0
  %v860 = vadd.f32 %v832, %v859
  %861 = vdwg.mxu0
  %v862 = vmul.f32 %v857, 0.25
  %v863 = vmul.f32 %v860, 0.25
  %v864 = vld [vmem:[%s9 + $0xe] sm:$0x1]
  %v865 = vperm.slane %v864, 0
  %866 = vmatpush.msra.mxu0 0.0
  %867 = vmatpush.msra.mxu0 0.0
  %868 = vmatpush.msra.mxu0 0.0
  %869 = vmatpush.msra.mxu0 0.0
  %870 = vmatpush.msra.mxu0 0.0
  %871 = vmatpush.msra.mxu0 0.0
  %872 = vmatpush.msra.mxu0 0.0
  %873 = vmatpush.msra.mxu0 0.0
  %874 = vmatpush.msra.mxu0 0.0
  %875 = vmatpush.msra.mxu0 0.0
  %876 = vmatpush.msra.mxu0 0.0
  %877 = vmatpush.msra.mxu0 0.0
  %878 = vmatpush.msra.mxu0 %v820
  %879 = vmatpush.msra.mxu0 %v819
  %880 = vmatpush.msra.mxu0 %v818
  %881 = vmatpush.msra.mxu0 %v817
  %882 = vmatmul.f32.gmra.mxu0 %v834
  %v883 = vpop.f32.mrf.mxu0
  %v884 = vadd.f32 %v865, %v883
  %885 = vmatmul.f32.gmra.mxu0 %v837
  %v886 = vpop.f32.mrf.mxu0
  %v887 = vadd.f32 %v865, %v886
  %888 = vdwg.mxu0
  %v889 = vld [vmem:[%s9 + $0xf] sm:$0x1]
  %v890 = vperm.slane %v889, 0
  %891 = vmatpush.msra.mxu0 0.0
  %892 = vmatpush.msra.mxu0 0.0
  %893 = vmatpush.msra.mxu0 0.0
  %894 = vmatpush.msra.mxu0 0.0
  %895 = vmatpush.msra.mxu0 0.0
  %896 = vmatpush.msra.mxu0 0.0
  %897 = vmatpush.msra.mxu0 0.0
  %898 = vmatpush.msra.mxu0 0.0
  %899 = vmatpush.msra.mxu0 0.0
  %900 = vmatpush.msra.mxu0 0.0
  %901 = vmatpush.msra.mxu0 0.0
  %902 = vmatpush.msra.mxu0 0.0
  %903 = vmatpush.msra.mxu0 %v825
  %904 = vmatpush.msra.mxu0 %v824
  %905 = vmatpush.msra.mxu0 %v823
  %906 = vmatpush.msra.mxu0 %v822
  %907 = vmatmul.f32.gmra.mxu0 %v834
  %v908 = vpop.f32.mrf.mxu0
  %v909 = vadd.f32 %v890, %v908
  %910 = vmatmul.f32.gmra.mxu0 %v837
  %v911 = vpop.f32.mrf.mxu0
  %v912 = vadd.f32 %v890, %v911
  %913 = vdwg.mxu0
  %v914 = vld [vmem:[%s1] sm:$0x1]
  %v915 = vperm.slane %v914, 0
  %v917 = vsel %vm202, %v862, 0
  %v920 = vsel %vm202, %v884, 0
  %922 = vmatpush.xpose.msra.mxu0 0.0
  %923 = vmatpush.xpose.msra.mxu0 0.0
  %924 = vmatpush.xpose.msra.mxu0 0.0
  %925 = vmatpush.xpose.msra.mxu0 0.0
  %926 = vmatpush.xpose.msra.mxu0 0.0
  %927 = vmatpush.xpose.msra.mxu0 0.0
  %928 = vmatpush.xpose.msra.mxu0 0.0
  %929 = vmatpush.xpose.msra.mxu0 0.0
  %930 = vmatpush.xpose.msra.mxu0 0.0
  %931 = vmatpush.xpose.msra.mxu0 0.0
  %932 = vmatpush.xpose.msra.mxu0 0.0
  %933 = vmatpush.xpose.msra.mxu0 0.0
  %934 = vmatpush.xpose.msra.mxu0 0.0
  %935 = vmatpush.xpose.msra.mxu0 0.0
  %936 = vmatpush.xpose.msra.mxu0 0.0
  %937 = vmatpush.xpose.msra.mxu0 %v920
  %938 = vmatmul.f32.gmra.mxu0 %v917
  %v939 = vpop.f32.mrf.mxu0
  %v940 = vadd.f32 %v915, %v939
  %941 = vdwg.mxu0
  %v942 = vsel %vm229, %v940, -inf
  %943 = vmax.xlane.f32.xlu0 %v942
  %v944 = vpop.xlane.xlu0 %943
  %v945 = vsub.f32 %v940, %v944
  %v946 = vmul.f32 %v945, 1.442695
  %v947 = vpow.pop %v946
  %v948 = vsel %vm229, %v947, 0.0
  %949 = vadd.xlane.f32.xlu0 %v948
  %v950 = vpop.xlane.xlu0 %949
  %v951 = vrcp.pop %v950
  %v952 = vmul.f32 %v950, %v951
  %v953 = vsub.f32 1.0, %v952
  %v954 = vmul.f32 %v951, %v953
  %v955 = vadd.f32 %v951, %v954
  %vm956 = vweird.f32 %v950
  %vm957 = vweird.f32 %v951
  %vm958 = vmor %vm956, %vm957
  %v959 = vsel %vm958, %v951, %v955
  %v960 = vand.u32 2147483647, %v950
  %vm961 = vcmp.eq.f32.partialorder %v960, 8.507059e+37
  %v962 = vand.u32 %v950, 2147483648
  %v963 = vor.u32 1.1754944e-38, %v962
  %v964 = vsel %vm961, %v963, %v959
  %v965 = vmul.f32 %v947, %v964
  %v967 = vsel %vm229, %v965, 0
  %969 = vmatpush.msra.mxu0 0.0
  %970 = vmatpush.msra.mxu0 0.0
  %971 = vmatpush.msra.mxu0 0.0
  %972 = vmatpush.msra.mxu0 0.0
  %973 = vmatpush.msra.mxu0 0.0
  %974 = vmatpush.msra.mxu0 0.0
  %975 = vmatpush.msra.mxu0 0.0
  %976 = vmatpush.msra.mxu0 0.0
  %977 = vmatpush.msra.mxu0 0.0
  %978 = vmatpush.msra.mxu0 0.0
  %979 = vmatpush.msra.mxu0 0.0
  %980 = vmatpush.msra.mxu0 0.0
  %981 = vmatpush.msra.mxu0 0.0
  %982 = vmatpush.msra.mxu0 0.0
  %983 = vmatpush.msra.mxu0 0.0
  %984 = vmatpush.msra.mxu0 %v909
  %985 = vmatmul.f32.gmra.mxu0 %v967
  %v986 = vpop.f32.mrf.mxu0
  %v987 = vadd.f32 0.0, %v986
  %988 = vdwg.mxu0
  %989 = vrot.lane.b32.xlu0 %v862, 112
  %v990 = vpop.permute.xlu0 %989
  %991 = vrot.lane.b32.xlu0 %v884, 112
  %v992 = vpop.permute.xlu0 %991
  %v993 = vsel %vm202, %v990, 0
  %v995 = vsel %vm202, %v992, 0
  %997 = vmatpush.xpose.msra.mxu0 0.0
  %998 = vmatpush.xpose.msra.mxu0 0.0
  %999 = vmatpush.xpose.msra.mxu0 0.0
  %1000 = vmatpush.xpose.msra.mxu0 0.0
  %1001 = vmatpush.xpose.msra.mxu0 0.0
  %1002 = vmatpush.xpose.msra.mxu0 0.0
  %1003 = vmatpush.xpose.msra.mxu0 0.0
  %1004 = vmatpush.xpose.msra.mxu0 0.0
  %1005 = vmatpush.xpose.msra.mxu0 0.0
  %1006 = vmatpush.xpose.msra.mxu0 0.0
  %1007 = vmatpush.xpose.msra.mxu0 0.0
  %1008 = vmatpush.xpose.msra.mxu0 0.0
  %1009 = vmatpush.xpose.msra.mxu0 0.0
  %1010 = vmatpush.xpose.msra.mxu0 0.0
  %1011 = vmatpush.xpose.msra.mxu0 0.0
  %1012 = vmatpush.xpose.msra.mxu0 %v995
  %1013 = vmatmul.f32.gmra.mxu0 %v993
  %v1014 = vpop.f32.mrf.mxu0
  %v1015 = vadd.f32 %v915, %v1014
  %1016 = vdwg.mxu0
  %v1017 = vsel %vm229, %v1015, -inf
  %1018 = vmax.xlane.f32.xlu0 %v1017
  %v1019 = vpop.xlane.xlu0 %1018
  %v1020 = vsub.f32 %v1015, %v1019
  %v1021 = vmul.f32 %v1020, 1.442695
  %v1022 = vpow.pop %v1021
  %v1023 = vsel %vm229, %v1022, 0.0
  %1024 = vadd.xlane.f32.xlu0 %v1023
  %v1025 = vpop.xlane.xlu0 %1024
  %v1026 = vrcp.pop %v1025
  %v1027 = vmul.f32 %v1025, %v1026
  %v1028 = vsub.f32 1.0, %v1027
  %v1029 = vmul.f32 %v1026, %v1028
  %v1030 = vadd.f32 %v1026, %v1029
  %vm1031 = vweird.f32 %v1025
  %vm1032 = vweird.f32 %v1026
  %vm1033 = vmor %vm1031, %vm1032
  %v1034 = vsel %vm1033, %v1026, %v1030
  %v1035 = vand.u32 2147483647, %v1025
  %vm1036 = vcmp.eq.f32.partialorder %v1035, 8.507059e+37
  %v1037 = vand.u32 %v1025, 2147483648
  %v1038 = vor.u32 1.1754944e-38, %v1037
  %v1039 = vsel %vm1036, %v1038, %v1034
  %v1040 = vmul.f32 %v1022, %v1039
  %1042 = vrot.lane.b32.xlu0 %v909, 112
  %v1043 = vpop.permute.xlu0 %1042
  %v1046 = vsel %vm229, %v1040, 0
  %1048 = vmatpush.msra.mxu0 0.0
  %1049 = vmatpush.msra.mxu0 0.0
  %1050 = vmatpush.msra.mxu0 0.0
  %1051 = vmatpush.msra.mxu0 0.0
  %1052 = vmatpush.msra.mxu0 0.0
  %1053 = vmatpush.msra.mxu0 0.0
  %1054 = vmatpush.msra.mxu0 0.0
  %1055 = vmatpush.msra.mxu0 0.0
  %1056 = vmatpush.msra.mxu0 0.0
  %1057 = vmatpush.msra.mxu0 0.0
  %1058 = vmatpush.msra.mxu0 0.0
  %1059 = vmatpush.msra.mxu0 0.0
  %1060 = vmatpush.msra.mxu0 0.0
  %1061 = vmatpush.msra.mxu0 0.0
  %1062 = vmatpush.msra.mxu0 0.0
  %1063 = vmatpush.msra.mxu0 %v1043
  %1064 = vmatmul.f32.gmra.mxu0 %v1046
  %v1065 = vpop.f32.mrf.mxu0
  %v1066 = vadd.f32 0.0, %v1065
  %1067 = vdwg.mxu0
  %v1069 = vsel %vm202, %v1066, 0
  %1071 = vmatpush.msra.mxu0 0.0
  %1072 = vmatpush.msra.mxu0 0.0
  %1073 = vmatpush.msra.mxu0 0.0
  %1074 = vmatpush.msra.mxu0 0.0
  %1075 = vmatpush.msra.mxu0 0.0
  %1076 = vmatpush.msra.mxu0 0.0
  %1077 = vmatpush.msra.mxu0 0.0
  %1078 = vmatpush.msra.mxu0 0.0
  %1079 = vmatpush.msra.mxu0 0.0
  %1080 = vmatpush.msra.mxu0 0.0
  %1081 = vmatpush.msra.mxu0 0.0
  %1082 = vmatpush.msra.mxu0 0.0
  %1083 = vmatpush.msra.mxu0 0.0
  %1084 = vmatpush.msra.mxu0 0.0
  %1085 = vmatpush.msra.mxu0 %v830
  %1086 = vmatpush.msra.mxu0 %v829
  %1087 = vmatmul.f32.gmra.mxu0 %v1069
  %v1088 = vpop.f32.mrf.mxu0
  %v1089 = vadd.f32 0.0, %v1088
  %1090 = vdwg.mxu0
  %v1092 = vsel %vm202, %v987, 0
  %1094 = vmatpush.msra.mxu0 0.0
  %1095 = vmatpush.msra.mxu0 0.0
  %1096 = vmatpush.msra.mxu0 0.0
  %1097 = vmatpush.msra.mxu0 0.0
  %1098 = vmatpush.msra.mxu0 0.0
  %1099 = vmatpush.msra.mxu0 0.0
  %1100 = vmatpush.msra.mxu0 0.0
  %1101 = vmatpush.msra.mxu0 0.0
  %1102 = vmatpush.msra.mxu0 0.0
  %1103 = vmatpush.msra.mxu0 0.0
  %1104 = vmatpush.msra.mxu0 0.0
  %1105 = vmatpush.msra.mxu0 0.0
  %1106 = vmatpush.msra.mxu0 0.0
  %1107 = vmatpush.msra.mxu0 0.0
  %1108 = vmatpush.msra.mxu0 %v828
  %1109 = vmatpush.msra.mxu0 %v827
  %1110 = vmatmul.f32.gmra.mxu0 %v1092
  %v1111 = vpop.f32.mrf.mxu0
  %v1112 = vadd.f32 %v1089, %v1111
  %1113 = vdwg.mxu0
  %v1114 = vld [vmem:[%s1 + $0x1] sm:$0x1]
  %v1115 = vperm.slane %v1114, 0
  %v1117 = vsel %vm202, %v863, 0
  %v1120 = vsel %vm202, %v887, 0
  %1122 = vmatpush.xpose.msra.mxu0 0.0
  %1123 = vmatpush.xpose.msra.mxu0 0.0
  %1124 = vmatpush.xpose.msra.mxu0 0.0
  %1125 = vmatpush.xpose.msra.mxu0 0.0
  %1126 = vmatpush.xpose.msra.mxu0 0.0
  %1127 = vmatpush.xpose.msra.mxu0 0.0
  %1128 = vmatpush.xpose.msra.mxu0 0.0
  %1129 = vmatpush.xpose.msra.mxu0 0.0
  %1130 = vmatpush.xpose.msra.mxu0 0.0
  %1131 = vmatpush.xpose.msra.mxu0 0.0
  %1132 = vmatpush.xpose.msra.mxu0 0.0
  %1133 = vmatpush.xpose.msra.mxu0 0.0
  %1134 = vmatpush.xpose.msra.mxu0 0.0
  %1135 = vmatpush.xpose.msra.mxu0 0.0
  %1136 = vmatpush.xpose.msra.mxu0 0.0
  %1137 = vmatpush.xpose.msra.mxu0 %v1120
  %1138 = vmatmul.f32.gmra.mxu0 %v1117
  %v1139 = vpop.f32.mrf.mxu0
  %v1140 = vadd.f32 %v1115, %v1139
  %1141 = vdwg.mxu0
  %v1142 = vsel %vm229, %v1140, -inf
  %1143 = vmax.xlane.f32.xlu0 %v1142
  %v1144 = vpop.xlane.xlu0 %1143
  %v1145 = vsub.f32 %v1140, %v1144
  %v1146 = vmul.f32 %v1145, 1.442695
  %v1147 = vpow.pop %v1146
  %v1148 = vsel %vm229, %v1147, 0.0
  %1149 = vadd.xlane.f32.xlu0 %v1148
  %v1150 = vpop.xlane.xlu0 %1149
  %v1151 = vrcp.pop %v1150
  %v1152 = vmul.f32 %v1150, %v1151
  %v1153 = vsub.f32 1.0, %v1152
  %v1154 = vmul.f32 %v1151, %v1153
  %v1155 = vadd.f32 %v1151, %v1154
  %vm1156 = vweird.f32 %v1150
  %vm1157 = vweird.f32 %v1151
  %vm1158 = vmor %vm1156, %vm1157
  %v1159 = vsel %vm1158, %v1151, %v1155
  %v1160 = vand.u32 2147483647, %v1150
  %vm1161 = vcmp.eq.f32.partialorder %v1160, 8.507059e+37
  %v1162 = vand.u32 %v1150, 2147483648
  %v1163 = vor.u32 1.1754944e-38, %v1162
  %v1164 = vsel %vm1161, %v1163, %v1159
  %v1165 = vmul.f32 %v1147, %v1164
  %v1167 = vsel %vm229, %v1165, 0
  %1169 = vmatpush.msra.mxu0 0.0
  %1170 = vmatpush.msra.mxu0 0.0
  %1171 = vmatpush.msra.mxu0 0.0
  %1172 = vmatpush.msra.mxu0 0.0
  %1173 = vmatpush.msra.mxu0 0.0
  %1174 = vmatpush.msra.mxu0 0.0
  %1175 = vmatpush.msra.mxu0 0.0
  %1176 = vmatpush.msra.mxu0 0.0
  %1177 = vmatpush.msra.mxu0 0.0
  %1178 = vmatpush.msra.mxu0 0.0
  %1179 = vmatpush.msra.mxu0 0.0
  %1180 = vmatpush.msra.mxu0 0.0
  %1181 = vmatpush.msra.mxu0 0.0
  %1182 = vmatpush.msra.mxu0 0.0
  %1183 = vmatpush.msra.mxu0 0.0
  %1184 = vmatpush.msra.mxu0 %v912
  %1185 = vmatmul.f32.gmra.mxu0 %v1167
  %v1186 = vpop.f32.mrf.mxu0
  %v1187 = vadd.f32 0.0, %v1186
  %1188 = vdwg.mxu0
  %1189 = vrot.lane.b32.xlu0 %v863, 112
  %v1190 = vpop.permute.xlu0 %1189
  %1191 = vrot.lane.b32.xlu0 %v887, 112
  %v1192 = vpop.permute.xlu0 %1191
  %v1193 = vsel %vm202, %v1190, 0
  %v1195 = vsel %vm202, %v1192, 0
  %1197 = vmatpush.xpose.msra.mxu0 0.0
  %1198 = vmatpush.xpose.msra.mxu0 0.0
  %1199 = vmatpush.xpose.msra.mxu0 0.0
  %1200 = vmatpush.xpose.msra.mxu0 0.0
  %1201 = vmatpush.xpose.msra.mxu0 0.0
  %1202 = vmatpush.xpose.msra.mxu0 0.0
  %1203 = vmatpush.xpose.msra.mxu0 0.0
  %1204 = vmatpush.xpose.msra.mxu0 0.0
  %1205 = vmatpush.xpose.msra.mxu0 0.0
  %1206 = vmatpush.xpose.msra.mxu0 0.0
  %1207 = vmatpush.xpose.msra.mxu0 0.0
  %1208 = vmatpush.xpose.msra.mxu0 0.0
  %1209 = vmatpush.xpose.msra.mxu0 0.0
  %1210 = vmatpush.xpose.msra.mxu0 0.0
  %1211 = vmatpush.xpose.msra.mxu0 0.0
  %1212 = vmatpush.xpose.msra.mxu0 %v1195
  %1213 = vmatmul.f32.gmra.mxu0 %v1193
  %v1214 = vpop.f32.mrf.mxu0
  %v1215 = vadd.f32 %v1115, %v1214
  %1216 = vdwg.mxu0
  %v1217 = vsel %vm229, %v1215, -inf
  %1218 = vmax.xlane.f32.xlu0 %v1217
  %v1219 = vpop.xlane.xlu0 %1218
  %v1220 = vsub.f32 %v1215, %v1219
  %v1221 = vmul.f32 %v1220, 1.442695
  %v1222 = vpow.pop %v1221
  %v1223 = vsel %vm229, %v1222, 0.0
  %1224 = vadd.xlane.f32.xlu0 %v1223
  %v1225 = vpop.xlane.xlu0 %1224
  %v1226 = vrcp.pop %v1225
  %v1227 = vmul.f32 %v1225, %v1226
  %v1228 = vsub.f32 1.0, %v1227
  %v1229 = vmul.f32 %v1226, %v1228
  %v1230 = vadd.f32 %v1226, %v1229
  %vm1231 = vweird.f32 %v1225
  %vm1232 = vweird.f32 %v1226
  %vm1233 = vmor %vm1231, %vm1232
  %v1234 = vsel %vm1233, %v1226, %v1230
  %v1235 = vand.u32 2147483647, %v1225
  %vm1236 = vcmp.eq.f32.partialorder %v1235, 8.507059e+37
  %v1237 = vand.u32 %v1225, 2147483648
  %v1238 = vor.u32 1.1754944e-38, %v1237
  %v1239 = vsel %vm1236, %v1238, %v1234
  %v1240 = vmul.f32 %v1222, %v1239
  %1242 = vrot.lane.b32.xlu0 %v912, 112
  %v1243 = vpop.permute.xlu0 %1242
  %v1246 = vsel %vm229, %v1240, 0
  %1248 = vmatpush.msra.mxu0 0.0
  %1249 = vmatpush.msra.mxu0 0.0
  %1250 = vmatpush.msra.mxu0 0.0
  %1251 = vmatpush.msra.mxu0 0.0
  %1252 = vmatpush.msra.mxu0 0.0
  %1253 = vmatpush.msra.mxu0 0.0
  %1254 = vmatpush.msra.mxu0 0.0
  %1255 = vmatpush.msra.mxu0 0.0
  %1256 = vmatpush.msra.mxu0 0.0
  %1257 = vmatpush.msra.mxu0 0.0
  %1258 = vmatpush.msra.mxu0 0.0
  %1259 = vmatpush.msra.mxu0 0.0
  %1260 = vmatpush.msra.mxu0 0.0
  %1261 = vmatpush.msra.mxu0 0.0
  %1262 = vmatpush.msra.mxu0 0.0
  %1263 = vmatpush.msra.mxu0 %v1243
  %1264 = vmatmul.f32.gmra.mxu0 %v1246
  %v1265 = vpop.f32.mrf.mxu0
  %v1266 = vadd.f32 0.0, %v1265
  %1267 = vdwg.mxu0
  %v1269 = vsel %vm202, %v1266, 0
  %1271 = vmatpush.msra.mxu0 0.0
  %1272 = vmatpush.msra.mxu0 0.0
  %1273 = vmatpush.msra.mxu0 0.0
  %1274 = vmatpush.msra.mxu0 0.0
  %1275 = vmatpush.msra.mxu0 0.0
  %1276 = vmatpush.msra.mxu0 0.0
  %1277 = vmatpush.msra.mxu0 0.0
  %1278 = vmatpush.msra.mxu0 0.0
  %1279 = vmatpush.msra.mxu0 0.0
  %1280 = vmatpush.msra.mxu0 0.0
  %1281 = vmatpush.msra.mxu0 0.0
  %1282 = vmatpush.msra.mxu0 0.0
  %1283 = vmatpush.msra.mxu0 0.0
  %1284 = vmatpush.msra.mxu0 0.0
  %1285 = vmatpush.msra.mxu0 %v830
  %1286 = vmatpush.msra.mxu0 %v829
  %1287 = vmatmul.f32.gmra.mxu0 %v1269
  %v1288 = vpop.f32.mrf.mxu0
  %v1289 = vadd.f32 0.0, %v1288
  %1290 = vdwg.mxu0
  %v1292 = vsel %vm202, %v1187, 0
  %1294 = vmatpush.msra.mxu0 0.0
  %1295 = vmatpush.msra.mxu0 0.0
  %1296 = vmatpush.msra.mxu0 0.0
  %1297 = vmatpush.msra.mxu0 0.0
  %1298 = vmatpush.msra.mxu0 0.0
  %1299 = vmatpush.msra.mxu0 0.0
  %1300 = vmatpush.msra.mxu0 0.0
  %1301 = vmatpush.msra.mxu0 0.0
  %1302 = vmatpush.msra.mxu0 0.0
  %1303 = vmatpush.msra.mxu0 0.0
  %1304 = vmatpush.msra.mxu0 0.0
  %1305 = vmatpush.msra.mxu0 0.0
  %1306 = vmatpush.msra.mxu0 0.0
  %1307 = vmatpush.msra.mxu0 0.0
  %1308 = vmatpush.msra.mxu0 %v828
  %1309 = vmatpush.msra.mxu0 %v827
  %1310 = vmatmul.f32.gmra.mxu0 %v1292
  %v1311 = vpop.f32.mrf.mxu0
  %v1312 = vadd.f32 %v1289, %v1311
  %1313 = vdwg.mxu0
  %v1314 = vld [vmem:[%s9 + $0x10] sm:$0x1]
  %v1315 = vperm.slane %v1314, 0
  %v1316 = vadd.f32 %v1112, %v1315
  %v1317 = vadd.f32 %v1312, %v1315
  %v1318 = vadd.f32 %v1316, %v809
  %v1319 = vadd.f32 %v1317, %v810
  %v1320 = vld [vmem:[%s9 + $0x11] sm:$0x1]
  %v1321 = vld [vmem:[%s9 + $0x12] sm:$0x1]
  %v1322 = vsel %vm39, %v1318, 0.0
  %1323 = vadd.xlane.f32.xlu0 %v1322
  %v1324 = vpop.xlane.xlu0 %1323
  %v1325 = vsel %vm39, %v1319, 0.0
  %1326 = vadd.xlane.f32.xlu0 %v1325
  %v1327 = vpop.xlane.xlu0 %1326
  %v1328 = vmul.f32 %v1324, %v52
  %v1329 = vmul.f32 %v1327, %v52
  %v1330 = vsub.f32 %v1318, %v1328
  %v1331 = vsub.f32 %v1319, %v1329
  %v1332 = vmul.f32 %v1330, %v1330
  %v1333 = vmul.f32 %v1331, %v1331
  %v1334 = vsel %vm39, %v1332, 0.0
  %1335 = vadd.xlane.f32.xlu0 %v1334
  %v1336 = vpop.xlane.xlu0 %1335
  %v1337 = vsel %vm39, %v1333, 0.0
  %1338 = vadd.xlane.f32.xlu0 %v1337
  %v1339 = vpop.xlane.xlu0 %1338
  %v1340 = vmul.f32 %v1336, %v52
  %v1341 = vmul.f32 %v1339, %v52
  %v1342 = vadd.f32 %v1340, 1e-12
  %v1343 = vadd.f32 %v1341, 1e-12
  %v1344 = vrsqrt.pop %v1342
  %v1345 = vmul.f32 %v1344, %v1342
  %v1346 = vmul.f32 %v1345, %v1344
  %v1347 = vmul.f32 0.5, %v1346
  %v1348 = vsub.f32 1.5, %v1347
  %v1349 = vmul.f32 %v1344, %v1348
  %vm1350 = vweird.f32 %v1342
  %vm1351 = vweird.f32 %v1344
  %vm1352 = vmor %vm1350, %vm1351
  %v1353 = vsel %vm1352, %v1344, %v1349
  %v1354 = vrsqrt.pop %v1343
  %v1355 = vmul.f32 %v1354, %v1343
  %v1356 = vmul.f32 %v1355, %v1354
  %v1357 = vmul.f32 0.5, %v1356
  %v1358 = vsub.f32 1.5, %v1357
  %v1359 = vmul.f32 %v1354, %v1358
  %vm1360 = vweird.f32 %v1343
  %vm1361 = vweird.f32 %v1354
  %vm1362 = vmor %vm1360, %vm1361
  %v1363 = vsel %vm1362, %v1354, %v1359
  %v1364 = vmul.f32 %v1330, %v1353
  %v1365 = vmul.f32 %v1331, %v1363
  %v1366 = vperm.slane %v1320, 0
  %v1367 = vmul.f32 %v1364, %v1366
  %v1368 = vmul.f32 %v1365, %v1366
  %v1369 = vperm.slane %v1321, 0
  %v1370 = vadd.f32 %v1367, %v1369
  %v1371 = vadd.f32 %v1368, %v1369
  %s1372 = scalar_lea.vmem %s6, 32
  %v1373 = vld [vmem:[%s1372] sm:$0xff]
  %v1374 = vld [vmem:[%s1372 + $0x8] sm:$0xff]
  %v1375 = vld [vmem:[%s1372 + $0x10] sm:$0xff]
  %v1376 = vld [vmem:[%s1372 + $0x18] sm:$0xff]
  %v1377 = vld [vmem:[%s9 + $0x13] sm:$0x1]
  %v1378 = vperm.slane %v1377, 0
  %v1380 = vsel %vm39, %v1370, 0
  %v1383 = vsel %vm39, %v1371, 0
  %1385 = vmatpush.msra.mxu0 0.0
  %1386 = vmatpush.msra.mxu0 0.0
  %1387 = vmatpush.msra.mxu0 0.0
  %1388 = vmatpush.msra.mxu0 0.0
  %1389 = vmatpush.msra.mxu0 0.0
  %1390 = vmatpush.msra.mxu0 0.0
  %1391 = vmatpush.msra.mxu0 0.0
  %1392 = vmatpush.msra.mxu0 0.0
  %1393 = vmatpush.msra.mxu0 0.0
  %1394 = vmatpush.msra.mxu0 0.0
  %1395 = vmatpush.msra.mxu0 0.0
  %1396 = vmatpush.msra.mxu0 0.0
  %1397 = vmatpush.msra.mxu0 %v1376
  %1398 = vmatpush.msra.mxu0 %v1375
  %1399 = vmatpush.msra.mxu0 %v1374
  %1400 = vmatpush.msra.mxu0 %v1373
  %1401 = vmatmul.f32.gmra.mxu0 %v1380
  %v1402 = vpop.f32.mrf.mxu0
  %v1403 = vadd.f32 %v1378, %v1402
  %1404 = vmatmul.f32.gmra.mxu0 %v1383
  %v1405 = vpop.f32.mrf.mxu0
  %v1406 = vadd.f32 %v1378, %v1405
  %1407 = vdwg.mxu0
  %v1408 = vmul.f32 %v1403, 0.5
  %v1409 = vmul.f32 %v1406, 0.5
  %v1410 = vmul.f32 %v1403, 0.044715
  %v1411 = vmul.f32 %v1406, 0.044715
  %v1412 = vmul.f32 %v1410, %v1403
  %v1413 = vmul.f32 %v1411, %v1406
  %v1414 = vmul.f32 %v1412, %v1403
  %v1415 = vmul.f32 %v1413, %v1406
  %v1416 = vadd.f32 %v1403, %v1414
  %v1417 = vadd.f32 %v1406, %v1415
  %v1418 = vmul.f32 %v1416, 0.7978846
  %v1419 = vmul.f32 %v1417, 0.7978846
  %v1420 = vtanh.pop %v1418
  %v1421 = vtanh.pop %v1419
  %v1422 = vadd.f32 %v1420, 1.0
  %v1423 = vadd.f32 %v1421, 1.0
  %v1424 = vmul.f32 %v1408, %v1422
  %v1425 = vmul.f32 %v1409, %v1423
  %s1426 = scalar_lea.vmem %s7, 64
  %v1427 = vld [vmem:[%s1426] sm:$0xff]
  %v1428 = vld [vmem:[%s1426 + $0x8] sm:$0xff]
  %v1429 = vld [vmem:[%s1426 + $0x10] sm:$0xff]
  %v1430 = vld [vmem:[%s1426 + $0x18] sm:$0xff]
  %v1431 = vld [vmem:[%s1426 + $0x20] sm:$0xff]
  %v1432 = vld [vmem:[%s1426 + $0x28] sm:$0xff]
  %v1433 = vld [vmem:[%s1426 + $0x30] sm:$0xff]
  %v1434 = vld [vmem:[%s1426 + $0x38] sm:$0xff]
  %v1435 = vld [vmem:[%s9 + $0x14] sm:$0x1]
  %v1436 = vperm.slane %v1435, 0
  %v1438 = vsel %vm723, %v1424, 0
  %v1441 = vsel %vm723, %v1425, 0
  %1443 = vmatpush.msra.mxu0 0.0
  %1444 = vmatpush.msra.mxu0 0.0
  %1445 = vmatpush.msra.mxu0 0.0
  %1446 = vmatpush.msra.mxu0 0.0
  %1447 = vmatpush.msra.mxu0 0.0
  %1448 = vmatpush.msra.mxu0 0.0
  %1449 = vmatpush.msra.mxu0 0.0
  %1450 = vmatpush.msra.mxu0 0.0
  %1451 = vmatpush.msra.mxu0 %v1434
  %1452 = vmatpush.msra.mxu0 %v1433
  %1453 = vmatpush.msra.mxu0 %v1432
  %1454 = vmatpush.msra.mxu0 %v1431
  %1455 = vmatpush.msra.mxu0 %v1430
  %1456 = vmatpush.msra.mxu0 %v1429
  %1457 = vmatpush.msra.mxu0 %v1428
  %1458 = vmatpush.msra.mxu0 %v1427
  %1459 = vmatmul.f32.gmra.mxu0 %v1438
  %v1460 = vpop.f32.mrf.mxu0
  %v1461 = vadd.f32 %v1436, %v1460
  %1462 = vmatmul.f32.gmra.mxu0 %v1441
  %v1463 = vpop.f32.mrf.mxu0
  %v1464 = vadd.f32 %v1436, %v1463
  %1465 = vdwg.mxu0
  %v1466 = vadd.f32 %v1461, %v1370
  %v1467 = vadd.f32 %v1464, %v1371
  %v1468 = vld [vmem:[%s9 + $0x15] sm:$0x1]
  %v1469 = vld [vmem:[%s9 + $0x16] sm:$0x1]
  %v1470 = vsel %vm39, %v1466, 0.0
  %1471 = vadd.xlane.f32.xlu0 %v1470
  %v1472 = vpop.xlane.xlu0 %1471
  %v1473 = vsel %vm39, %v1467, 0.0
  %1474 = vadd.xlane.f32.xlu0 %v1473
  %v1475 = vpop.xlane.xlu0 %1474
  %v1476 = vmul.f32 %v1472, %v52
  %v1477 = vmul.f32 %v1475, %v52
  %v1478 = vsub.f32 %v1466, %v1476
  %v1479 = vsub.f32 %v1467, %v1477
  %v1480 = vmul.f32 %v1478, %v1478
  %v1481 = vmul.f32 %v1479, %v1479
  %v1482 = vsel %vm39, %v1480, 0.0
  %1483 = vadd.xlane.f32.xlu0 %v1482
  %v1484 = vpop.xlane.xlu0 %1483
  %v1485 = vsel %vm39, %v1481, 0.0
  %1486 = vadd.xlane.f32.xlu0 %v1485
  %v1487 = vpop.xlane.xlu0 %1486
  %v1488 = vmul.f32 %v1484, %v52
  %v1489 = vmul.f32 %v1487, %v52
  %v1490 = vadd.f32 %v1488, 1e-12
  %v1491 = vadd.f32 %v1489, 1e-12
  %v1492 = vrsqrt.pop %v1490
  %v1493 = vmul.f32 %v1492, %v1490
  %v1494 = vmul.f32 %v1493, %v1492
  %v1495 = vmul.f32 0.5, %v1494
  %v1496 = vsub.f32 1.5, %v1495
  %v1497 = vmul.f32 %v1492, %v1496
  %vm1498 = vweird.f32 %v1490
  %vm1499 = vweird.f32 %v1492
  %vm1500 = vmor %vm1498, %vm1499
  %v1501 = vsel %vm1500, %v1492, %v1497
  %v1502 = vrsqrt.pop %v1491
  %v1503 = vmul.f32 %v1502, %v1491
  %v1504 = vmul.f32 %v1503, %v1502
  %v1505 = vmul.f32 0.5, %v1504
  %v1506 = vsub.f32 1.5, %v1505
  %v1507 = vmul.f32 %v1502, %v1506
  %vm1508 = vweird.f32 %v1491
  %vm1509 = vweird.f32 %v1502
  %vm1510 = vmor %vm1508, %vm1509
  %v1511 = vsel %vm1510, %v1502, %v1507
  %v1512 = vmul.f32 %v1478, %v1501
  %v1513 = vmul.f32 %v1479, %v1511
  %v1514 = vperm.slane %v1468, 0
  %v1515 = vmul.f32 %v1512, %v1514
  %v1516 = vmul.f32 %v1513, %v1514
  %v1517 = vperm.slane %v1469, 0
  %v1518 = vadd.f32 %v1515, %v1517
  %v1519 = vadd.f32 %v1516, %v1517
  %1520 = vst.msk [vmem:[#allocation2] sm:$0xff] %vm39, %v1518
  %1521 = vst.msk [vmem:[#allocation2 + $0x8] sm:$0xff] %vm39, %v1519
  %v1522 = vld [vmem:[#allocation2] sm:$0xff]
  %v1523 = vld [vmem:[#allocation2 + $0x8] sm:$0xff]
  %v1524 = vld [vmem:[%s8] sm:$0xff]
  %v1525 = vld [vmem:[%s8 + $0x8] sm:$0xff]
  %v1526 = vld [vmem:[%s8 + $0x10] sm:$0xff]
  %v1527 = vld [vmem:[%s8 + $0x18] sm:$0xff]
  %v1528 = vld [vmem:[%s9 + $0x2] sm:$0x1]
  %v1529 = vperm.slane %v1528, 0
  %v1531 = vsel %vm39, %v1522, 0
  %v1534 = vsel %vm39, %v1523, 0
  %1536 = vmatpush.msra.mxu0 0.0
  %1537 = vmatpush.msra.mxu0 0.0
  %1538 = vmatpush.msra.mxu0 0.0
  %1539 = vmatpush.msra.mxu0 0.0
  %1540 = vmatpush.msra.mxu0 0.0
  %1541 = vmatpush.msra.mxu0 0.0
  %1542 = vmatpush.msra.mxu0 0.0
  %1543 = vmatpush.msra.mxu0 0.0
  %1544 = vmatpush.msra.mxu0 0.0
  %1545 = vmatpush.msra.mxu0 0.0
  %1546 = vmatpush.msra.mxu0 0.0
  %1547 = vmatpush.msra.mxu0 0.0
  %1548 = vmatpush.msra.mxu0 %v1527
  %1549 = vmatpush.msra.mxu0 %v1526
  %1550 = vmatpush.msra.mxu0 %v1525
  %1551 = vmatpush.msra.mxu0 %v1524
  %1552 = vmatmul.f32.gmra.mxu0 %v1531
  %v1553 = vpop.f32.mrf.mxu0
  %v1554 = vadd.f32 %v1529, %v1553
  %1555 = vmatmul.f32.gmra.mxu0 %v1534
  %v1556 = vpop.f32.mrf.mxu0
  %v1557 = vadd.f32 %v1529, %v1556
  %1558 = vdwg.mxu0
  %1559 = vst [vmem:[%s10] sm:$0xff] %v1554
  %1560 = vst [vmem:[%s10 + $0x8] sm:$0xff] %v1557
  // Predicated region
  $region42: #{teacher_model_forward.1} parent=0 // pred_check
    _
  $region43: #{teacher_model_forward.1} parent=0 // pred_check_branch
    %1562 = sbr.rel (0) target = $region45
  $region44: #{teacher_model_forward.1} parent=0 // pred_region
    _
  $region45: #{teacher_model_forward.1} parent=0 // pred_fallthru
    _
  // Predicated region
  $region46: #{teacher_model_forward.1} parent=0 // pred_check
    _
  $region47: #{teacher_model_forward.1} parent=0 // pred_check_branch
    %1564 = sbr.rel (0) target = $region49
  $region48: #{teacher_model_forward.1} parent=0 // pred_region
    _
  $region49: #{teacher_model_forward.1} parent=0 // pred_fallthru
    _

</llo_original>
